<compile_context>
chip_gen: v7x
topology: tpu7x:2x2x1
jax: 0.10.0
libtpu: 0.0.40
codegen_flags: <defaults>
</compile_context>

<pallas_src>
import jax
import jax.numpy as jnp
from jax.experimental import pallas as pl
from jax.experimental.pallas import tpu as pltpu


# --------------------------------------------------------------------------------------
# Kernel
# --------------------------------------------------------------------------------------
def window_attention_kernel(x_ref, wqkv_ref, bqkv_ref, wout_ref, bout_ref,
                            relb_ref, mask_ref, o_ref):
    """One grid step == one block of `blk = n_rep * nW` consecutive (window*batch) rows.

    x_ref    : (blk*N, C)     bf16  tokens (B_ and N merged -> lane-dense 2-D slab)
    wqkv_ref : (C, 3C)        bf16  fused qkv weight (q columns pre-scaled),  resident
    bqkv_ref : (1, 3C)        f32   fused qkv bias   (q part pre-scaled),     resident
    wout_ref : (C, C)         bf16  output-projection weight,                 resident
    bout_ref : (1, C)         f32   output-projection bias,                   resident
    relb_ref : (H, nW, N, N)  bf16  relative-position bias * rel_mask,        resident
    mask_ref : (nW, N, N)     f32   attention mask (0 / large-negative),      resident
    o_ref    : (blk*N, C)     bf16  output slab
    """
    rows, C = x_ref.shape
    H, nW, N, _ = relb_ref.shape
    hd = C // H
    blk = rows // N
    n_rep = blk // nW

    x2 = x_ref[...]                                                       # (rows, C) bf16

    # --- fused QKV projection: one wide MXU matmul, f32 accumulation -----------------
    qkv = jnp.dot(x2, wqkv_ref[...],
                  preferred_element_type=jnp.float32) + bqkv_ref[...]     # (rows, 3C) f32

    # --- head split: lanes -> batch (static lane slices + leading-dim concat) --------
    def split_heads(col0):
        parts = [qkv[:, col0 + h * hd: col0 + (h + 1) * hd].reshape(blk, N, hd)
                 for h in range(H)]
        return jnp.concatenate(parts, axis=0).astype(jnp.bfloat16)        # (H*blk, N, hd)

    q = split_heads(0)
    k = split_heads(C)
    v = split_heads(2 * C)

    # --- batched attention over all (head, window) pairs -----------------------------
    s = jnp.einsum('bnd,bmd->bnm', q, k,
                   preferred_element_type=jnp.float32)                    # (H*blk, N, N)
    s = s.reshape(H, n_rep, nW, N, N)
    s = s + relb_ref[...].astype(jnp.float32)[:, None] + mask_ref[...][None, None]
    s = s.reshape(H * blk, N, N)

    # Numerically-stable softmax in f32; reciprocal lands on the EUP slot.
    m = jnp.max(s, axis=-1, keepdims=True)
    p = jnp.exp(s - m)
    denom = jnp.sum(p, axis=-1, keepdims=True)
    p = (p * pl.reciprocal(denom, approx=True)).astype(jnp.bfloat16)
    # attn_drop is nn.Dropout(0.0) -> identity.

    o = jnp.einsum('bnm,bmd->bnd', p, v,
                   preferred_element_type=jnp.float32)                    # (H*blk, N, hd)

    # --- merge heads back to lanes, then one wide output projection ------------------
    o3 = o.reshape(H, blk * N, hd)
    o_cat = jnp.concatenate([o3[h] for h in range(H)], axis=-1).astype(jnp.bfloat16)
    y = jnp.dot(o_cat, wout_ref[...],
                preferred_element_type=jnp.float32) + bout_ref[...]       # (rows, C) f32
    # proj_drop is nn.Dropout(0.0) -> identity.
    o_ref[...] = y.astype(o_ref.dtype)


# --------------------------------------------------------------------------------------
# VMEM-budget-aware block-size selection
# --------------------------------------------------------------------------------------
def _round_up(v, m):
    return ((v + m - 1) // m) * m


def _vmem_capacity_bytes():
    try:
        info = pltpu.get_tpu_info()
        cap = getattr(info, "vmem_capacity_bytes", None)
        if cap:
            return int(cap)
    except Exception:
        pass
    return 64 * 2 ** 20      # conservative default (v7x per-TensorCore VMEM)


def _block_vmem_bytes(n_rep, nW, N, C, H):
    """Padded estimate of one grid step's live working set (lane pad 128, sublane pad 8)."""
    lp = lambda n: _round_up(n, 128)
    sp = lambda n: _round_up(n, 8)
    hd = C // H
    blk = n_rep * nW
    rows = blk * N
    b = 0
    b += 2 * 2 * sp(rows) * lp(C) * 2                 # pipelined in + out blocks (bf16, double-buffered)
    b += sp(rows) * lp(3 * C) * 4                     # fused qkv activation (f32)
    b += 3 * H * blk * sp(N) * lp(hd) * 2             # q / k / v (bf16, head-batched)
    b += H * blk * sp(N) * lp(N) * (4 + 2)            # scores (f32) + probabilities (bf16)
    b += H * blk * sp(N) * lp(hd) * 4                 # attention output (f32)
    b += sp(rows) * lp(C) * (2 + 4)                   # merged heads (bf16) + projected rows (f32)
    return b


def _resident_vmem_bytes(nW, N, C, H):
    lp = lambda n: _round_up(n, 128)
    sp = lambda n: _round_up(n, 8)
    b = 0
    b += sp(C) * lp(3 * C) * 2 + 8 * lp(3 * C) * 4    # qkv weight (bf16) + bias (f32)
    b += sp(C) * lp(C) * 2 + 8 * lp(C) * 4            # proj weight (bf16) + bias (f32)
    b += H * nW * sp(N) * lp(N) * 2                   # relative-position bias (bf16)
    b += nW * sp(N) * lp(N) * 4                       # mask (f32)
    return 2 * b                                      # default double-buffering of constant operands


def _pick_windows_per_block(B, nW, N, C, H, max_windows_per_block):
    """Pick n_rep (repeats of the nW-window cycle per grid step).

    Keeps the grid >= 2 steps when possible (so both v7x TensorCores get work), keeps
    the block row count sublane-tile aligned for bf16, and keeps the padded working set
    inside roughly half of this generation's VMEM capacity.
    """
    budget = int(_vmem_capacity_bytes() * 0.5) - _resident_vmem_bytes(nW, N, C, H)
    min_steps = 2 if B >= 2 else 1
    n_rep = 1
    for d in range(1, B + 1):
        if B % d != 0:
            continue
        if d * nW > max_windows_per_block:
            continue
        if B // d < min_steps:
            continue
        if (B // d) > 1 and (d * nW * N) % 16 != 0:   # bf16 sublane-tile alignment of blocks
            continue
        if _block_vmem_bytes(d, nW, N, C, H) > budget:
            continue
        n_rep = d
    if (B // n_rep) > 1 and (n_rep * nW * N) % 16 != 0:
        n_rep = B                                     # fall back to a single full-array block
    return n_rep


# --------------------------------------------------------------------------------------
# Wrapper
# --------------------------------------------------------------------------------------
def prepare_window_attention_params(wqkv_t, bqkv, wproj_t, bproj,
                                     rel_pos_table, pos_idx, mask, num_heads):
    """One-time re-layout of the module parameters for the kernel.

    Pure XLA glue (gather / transpose / scale / casts): hoist / jit this once per model
    rather than re-running it on every forward call.
    """
    C = wqkv_t.shape[0]
    H = num_heads
    hd = C // H
    nW, N, _ = mask.shape
    scale = hd ** (-0.5)

    # Fold the qk scale into the q columns of the fused qkv weight / bias.
    wqkv = wqkv_t.astype(jnp.float32).at[:, :C].multiply(scale).astype(jnp.bfloat16)   # (C, 3C)
    bq = bqkv.astype(jnp.float32).at[:C].multiply(scale).reshape(1, 3 * C)             # (1, 3C)

    wout = wproj_t.astype(jnp.bfloat16)                                                # (C, C)
    bout = bproj.reshape(1, C).astype(jnp.float32)

    # Relative-position bias exactly as the PyTorch module builds it:
    # gather with masked indices, then zero the bias at masked positions.
    mask_b = mask.astype(bool)
    rel_pos_mask = jnp.where(mask_b, 0.0, 1.0)                                         # (nW, N, N)
    pos_idx_m = jnp.where(mask_b, 0, pos_idx).reshape(-1)
    rel_bias = rel_pos_table[pos_idx_m].reshape(nW, N, N, H) * rel_pos_mask[..., None]
    rel_bias = jnp.transpose(rel_bias, (3, 0, 1, 2)).astype(jnp.bfloat16)              # (H, nW, N, N)
    mask_f32 = mask.astype(jnp.float32)    # mask kept f32 so the large-negative add stays exact

    return dict(wqkv=wqkv, bqkv=bq, wout=wout, bout=bout,
                rel_bias=rel_bias, mask=mask_f32, num_heads=H)


def window_attention(x, params, *, max_windows_per_block=64, out_dtype=jnp.bfloat16):
    """Forward pass of WindowAttention. x: (B_, N, C) with B_ = batch * num_windows."""
    B_, N, C = x.shape
    H = params["num_heads"]
    nW = params["mask"].shape[0]
    assert B_ % nW == 0, "B_ must be batch * num_windows"
    B = B_ // nW

    n_rep = _pick_windows_per_block(B, nW, N, C, H, max_windows_per_block)
    blk = n_rep * nW
    rows_blk = blk * N
    grid = (B_ // blk,)

    # Present tokens as a lane-dense 2-D slab.
    # TODO(synk): accept bf16 activations at the module boundary so this cast (an extra
    # HBM pass) can be removed entirely.
    x2 = x.reshape(B_ * N, C).astype(jnp.bfloat16)

    cap = _vmem_capacity_bytes()

    out2 = pl.pallas_call(
        window_attention_kernel,
        out_shape=jax.ShapeDtypeStruct((B_ * N, C), out_dtype),
        grid_spec=pltpu.PrefetchScalarGridSpec(
            num_scalar_prefetch=0,
            grid=grid,
            in_specs=[
                pl.BlockSpec((rows_blk, C), lambda b: (b, 0)),          # x (blocked over rows)
                pl.BlockSpec((C, 3 * C), lambda b: (0, 0)),             # fused qkv weight (resident)
                pl.BlockSpec((1, 3 * C), lambda b: (0, 0)),             # fused qkv bias   (resident)
                pl.BlockSpec((C, C), lambda b: (0, 0)),                 # proj weight      (resident)
                pl.BlockSpec((1, C), lambda b: (0, 0)),                 # proj bias        (resident)
                pl.BlockSpec((H, nW, N, N), lambda b: (0, 0, 0, 0)),    # rel-pos bias     (resident, bf16)
                pl.BlockSpec((nW, N, N), lambda b: (0, 0, 0)),          # attention mask   (resident, f32)
            ],
            out_specs=pl.BlockSpec((rows_blk, C), lambda b: (b, 0)),
        ),
        compiler_params=pltpu.CompilerParams(
            dimension_semantics=("parallel",),
            vmem_limit_bytes=int(cap * 0.9)),
    )(x2, params["wqkv"], params["bqkv"], params["wout"], params["bout"],
      params["rel_bias"], params["mask"])

    return out2.reshape(B_, N, C)


# --------------------------------------------------------------------------------------
# Helpers for the self-check
# --------------------------------------------------------------------------------------
def make_relative_position_index(window_size):
    Wh, Ww = window_size
    coords_h = jnp.arange(Wh)
    coords_w = jnp.arange(Ww)
    coords = jnp.stack(jnp.meshgrid(coords_h, coords_w, indexing="ij"))       # (2, Wh, Ww)
    coords_flatten = coords.reshape(2, -1)                                    # (2, N)
    relative_coords = coords_flatten[:, :, None] - coords_flatten[:, None, :] # (2, N, N)
    relative_coords = jnp.transpose(relative_coords, (1, 2, 0))               # (N, N, 2)
    rc0 = relative_coords[..., 0] + Wh - 1
    rc1 = relative_coords[..., 1] + Ww - 1
    return (rc0 * (2 * Ww - 1) + rc1).astype(jnp.int32)                       # (N, N)


def reference_forward(x, wqkv_t, bqkv, wproj_t, bproj, table, pos_idx, mask, num_heads):
    """Pure-JAX f32 transcription of the PyTorch forward, for verification."""
    B_, N, C = x.shape
    nW = mask.shape[0]
    head_dim = C // num_heads
    qkv = (x @ wqkv_t + bqkv).reshape(B_, N, 3, num_heads, head_dim)
    qkv = jnp.transpose(qkv, (2, 0, 3, 1, 4))
    q, k, v = qkv[0], qkv[1], qkv[2]
    q = q * head_dim ** (-0.5)
    attn = jnp.einsum("bhnd,bhmd->bhnm", q, k)
    mask_b = mask.astype(bool)
    rel_pos_mask = jnp.where(mask_b, 0.0, 1.0)
    pos_idx_m = jnp.where(mask_b, 0, pos_idx).reshape(-1)
    bias = table[pos_idx_m].reshape(nW, N, N, num_heads) * rel_pos_mask[..., None]
    bias = jnp.transpose(bias, (0, 3, 1, 2))
    attn = attn.reshape(B_ // nW, nW, num_heads, N, N) + bias[None]
    attn = attn + mask[None, :, None, :, :]
    attn = attn.reshape(B_, num_heads, N, N)
    attn = jax.nn.softmax(attn, axis=-1)
    out = jnp.einsum("bhnm,bhmd->bhnd", attn, v)
    out = jnp.transpose(out, (0, 2, 1, 3)).reshape(B_, N, C)
    return out @ wproj_t + bproj


# --------------------------------------------------------------------------------------
# Demo / self-check
# --------------------------------------------------------------------------------------
if __name__ == "__main__":
    # Small, module-consistent shapes.
    dim = 32                    # C
    num_heads = 4
    window_size = (4, 4)        # N = 16
    N = window_size[0] * window_size[1]
    nW = 2                      # number of windows
    batch = 2
    B_ = batch * nW             # (num_windows * B, N, C) input

    key = jax.random.PRNGKey(0)
    k_x, k_tab, k_wqkv, k_bqkv, k_wp, k_bp = jax.random.split(key, 6)

    x = jax.random.normal(k_x, (B_, N, dim), dtype=jnp.float32)

    table_size = (2 * window_size[0] - 1) * (2 * window_size[1] - 1)
    rel_pos_table = 0.02 * jax.random.normal(k_tab, (table_size, num_heads), dtype=jnp.float32)
    wqkv_t = 0.05 * jax.random.normal(k_wqkv, (dim, 3 * dim), dtype=jnp.float32)   # qkv.weight.T
    bqkv = 0.05 * jax.random.normal(k_bqkv, (3 * dim,), dtype=jnp.float32)
    wproj_t = 0.05 * jax.random.normal(k_wp, (dim, dim), dtype=jnp.float32)        # proj.weight.T
    bproj = 0.05 * jax.random.normal(k_bp, (dim,), dtype=jnp.float32)

    # pos_idx: relative_position_index broadcast per window, shape (nW, N, N)
    rel_pos_index = make_relative_position_index(window_size)                      # (N, N)
    pos_idx = jnp.broadcast_to(rel_pos_index[None], (nW, N, N)).astype(jnp.int32)

    # mask: (nW, N, N), 0 / large-negative (shifted-window style mask on window 1)
    ii = jnp.arange(N)[:, None]
    jj = jnp.arange(N)[None, :]
    shifted_mask = jnp.where((ii < N // 2) != (jj < N // 2), -100.0, 0.0)
    mask = jnp.stack([jnp.zeros((N, N), jnp.float32), shifted_mask.astype(jnp.float32)])

    # One-time parameter re-layout (hoistable / jittable per model).
    params = prepare_window_attention_params(wqkv_t, bqkv, wproj_t, bproj,
                                             rel_pos_table, pos_idx, mask, num_heads)

    out = window_attention(x, params)
    out = jax.block_until_ready(out)

    ref = reference_forward(x, wqkv_t, bqkv, wproj_t, bproj,
                            rel_pos_table, pos_idx, mask, num_heads)
    assert out.shape == (B_, N, dim)
    # Tolerance vs the f32 reference: bf16 MXU inputs / bf16 output (f32 accumulation,
    # f32 softmax) and the approximate EUP reciprocal.
    assert jnp.allclose(out.astype(jnp.float32), ref, atol=2e-2, rtol=2e-2), \
        "Pallas output mismatch vs reference"

    print("KERNEL_OK")
</pallas_src>

<mosaic_0001>
module attributes {stable_mosaic.version = 11 : i64} {
  func.func @window_attention_kernel(%arg0: i32, %arg1: memref<32x32xbf16, #tpu.memory_space<vmem>>, %arg2: memref<32x96xbf16, #tpu.memory_space<vmem>>, %arg3: memref<1x96xf32, #tpu.memory_space<vmem>>, %arg4: memref<32x32xbf16, #tpu.memory_space<vmem>>, %arg5: memref<1x32xf32, #tpu.memory_space<vmem>>, %arg6: memref<4x2x16x16xbf16, #tpu.memory_space<vmem>>, %arg7: memref<2x16x16xf32, #tpu.memory_space<vmem>>, %arg8: memref<32x32xbf16, #tpu.memory_space<vmem>>) attributes {dimension_semantics = [#tpu.dimension_semantics<parallel>], iteration_bounds = array<i64: 2>, scalar_prefetch = 0 : i64, scratch_operands = 0 : i64, tpu.core_type = #tpu.core_type<tc>, window_params = [{transform_indices = @transform_0, window_bounds = array<i64: 32, 32>}, {pipeline_mode = #tpu.pipeline_mode<synchronous>, transform_indices = @transform_1, window_bounds = array<i64: 32, 96>}, {pipeline_mode = #tpu.pipeline_mode<synchronous>, transform_indices = @transform_2, window_bounds = array<i64: 1, 96>}, {pipeline_mode = #tpu.pipeline_mode<synchronous>, transform_indices = @transform_3, window_bounds = array<i64: 32, 32>}, {pipeline_mode = #tpu.pipeline_mode<synchronous>, transform_indices = @transform_4, window_bounds = array<i64: 1, 32>}, {pipeline_mode = #tpu.pipeline_mode<synchronous>, transform_indices = @transform_5, window_bounds = array<i64: 4, 2, 16, 16>}, {pipeline_mode = #tpu.pipeline_mode<synchronous>, transform_indices = @transform_6, window_bounds = array<i64: 2, 16, 16>}, {transform_indices = @transform_7, window_bounds = array<i64: 32, 32>}]} {
    %c0 = arith.constant 0 : index
    %c0_0 = arith.constant 0 : index
    %0 = vector.load %arg1[%c0, %c0_0] : memref<32x32xbf16, #tpu.memory_space<vmem>>, vector<32x32xbf16>
    %c0_1 = arith.constant 0 : index
    %c0_2 = arith.constant 0 : index
    %1 = vector.load %arg2[%c0_1, %c0_2] : memref<32x96xbf16, #tpu.memory_space<vmem>>, vector<32x96xbf16>
    %cst = arith.constant dense<0.000000e+00> : vector<32x96xf32>
    %2 = tpu.matmul %0, %1, %cst {dimension_numbers = #tpu.dot_dimension_numbers<[1], [0], [0], [1], [0, 0, 1, 1], [], []>} : vector<32x32xbf16>, vector<32x96xbf16>, vector<32x96xf32> -> vector<32x96xf32>
    %c0_3 = arith.constant 0 : index
    %c0_4 = arith.constant 0 : index
    %3 = vector.load %arg3[%c0_3, %c0_4] : memref<1x96xf32, #tpu.memory_space<vmem>>, vector<1x96xf32>
    %4 = vector.broadcast %3 : vector<1x96xf32> to vector<32x96xf32>
    %5 = arith.addf %2, %4 : vector<32x96xf32>
    %6 = vector.extract_strided_slice %5 {offsets = [0, 0], sizes = [32, 8], strides = [1, 1]} : vector<32x96xf32> to vector<32x8xf32>
    %7 = vector.shape_cast %6 : vector<32x8xf32> to vector<2x16x8xf32>
    %8 = vector.extract_strided_slice %5 {offsets = [0, 8], sizes = [32, 8], strides = [1, 1]} : vector<32x96xf32> to vector<32x8xf32>
    %9 = vector.shape_cast %8 : vector<32x8xf32> to vector<2x16x8xf32>
    %10 = vector.extract_strided_slice %5 {offsets = [0, 16], sizes = [32, 8], strides = [1, 1]} : vector<32x96xf32> to vector<32x8xf32>
    %11 = vector.shape_cast %10 : vector<32x8xf32> to vector<2x16x8xf32>
    %12 = vector.extract_strided_slice %5 {offsets = [0, 24], sizes = [32, 8], strides = [1, 1]} : vector<32x96xf32> to vector<32x8xf32>
    %13 = vector.shape_cast %12 : vector<32x8xf32> to vector<2x16x8xf32>
    %14 = tpu.concatenate %7, %9, %11, %13 in 0 : vector<2x16x8xf32>, vector<2x16x8xf32>, vector<2x16x8xf32>, vector<2x16x8xf32> -> vector<8x16x8xf32>
    %15 = arith.truncf %14 : vector<8x16x8xf32> to vector<8x16x8xbf16>
    %16 = vector.extract_strided_slice %5 {offsets = [0, 32], sizes = [32, 8], strides = [1, 1]} : vector<32x96xf32> to vector<32x8xf32>
    %17 = vector.shape_cast %16 : vector<32x8xf32> to vector<2x16x8xf32>
    %18 = vector.extract_strided_slice %5 {offsets = [0, 40], sizes = [32, 8], strides = [1, 1]} : vector<32x96xf32> to vector<32x8xf32>
    %19 = vector.shape_cast %18 : vector<32x8xf32> to vector<2x16x8xf32>
    %20 = vector.extract_strided_slice %5 {offsets = [0, 48], sizes = [32, 8], strides = [1, 1]} : vector<32x96xf32> to vector<32x8xf32>
    %21 = vector.shape_cast %20 : vector<32x8xf32> to vector<2x16x8xf32>
    %22 = vector.extract_strided_slice %5 {offsets = [0, 56], sizes = [32, 8], strides = [1, 1]} : vector<32x96xf32> to vector<32x8xf32>
    %23 = vector.shape_cast %22 : vector<32x8xf32> to vector<2x16x8xf32>
    %24 = tpu.concatenate %17, %19, %21, %23 in 0 : vector<2x16x8xf32>, vector<2x16x8xf32>, vector<2x16x8xf32>, vector<2x16x8xf32> -> vector<8x16x8xf32>
    %25 = arith.truncf %24 : vector<8x16x8xf32> to vector<8x16x8xbf16>
    %26 = vector.extract_strided_slice %5 {offsets = [0, 64], sizes = [32, 8], strides = [1, 1]} : vector<32x96xf32> to vector<32x8xf32>
    %27 = vector.shape_cast %26 : vector<32x8xf32> to vector<2x16x8xf32>
    %28 = vector.extract_strided_slice %5 {offsets = [0, 72], sizes = [32, 8], strides = [1, 1]} : vector<32x96xf32> to vector<32x8xf32>
    %29 = vector.shape_cast %28 : vector<32x8xf32> to vector<2x16x8xf32>
    %30 = vector.extract_strided_slice %5 {offsets = [0, 80], sizes = [32, 8], strides = [1, 1]} : vector<32x96xf32> to vector<32x8xf32>
    %31 = vector.shape_cast %30 : vector<32x8xf32> to vector<2x16x8xf32>
    %32 = vector.extract_strided_slice %5 {offsets = [0, 88], sizes = [32, 8], strides = [1, 1]} : vector<32x96xf32> to vector<32x8xf32>
    %33 = vector.shape_cast %32 : vector<32x8xf32> to vector<2x16x8xf32>
    %34 = tpu.concatenate %27, %29, %31, %33 in 0 : vector<2x16x8xf32>, vector<2x16x8xf32>, vector<2x16x8xf32>, vector<2x16x8xf32> -> vector<8x16x8xf32>
    %35 = arith.truncf %34 : vector<8x16x8xf32> to vector<8x16x8xbf16>
    "tpu.trace_start"() <{level = 10 : i32, message = "bnd,bmd->bnm"}> : () -> ()
    %cst_5 = arith.constant dense<0.000000e+00> : vector<8x16x16xf32>
    %36 = tpu.matmul %15, %25, %cst_5 {dimension_numbers = #tpu.dot_dimension_numbers<[2], [2], [1], [1], [0, 0, 0, 1, 1, 1], [0], [0]>} : vector<8x16x8xbf16>, vector<8x16x8xbf16>, vector<8x16x16xf32> -> vector<8x16x16xf32>
    "tpu.trace_stop"() : () -> ()
    %37 = vector.shape_cast %36 : vector<8x16x16xf32> to vector<4x1x2x16x16xf32>
    %c0_6 = arith.constant 0 : index
    %c0_7 = arith.constant 0 : index
    %c0_8 = arith.constant 0 : index
    %c0_9 = arith.constant 0 : index
    %38 = vector.load %arg6[%c0_6, %c0_7, %c0_8, %c0_9] : memref<4x2x16x16xbf16, #tpu.memory_space<vmem>>, vector<4x2x16x16xbf16>
    %39 = arith.extf %38 : vector<4x2x16x16xbf16> to vector<4x2x16x16xf32>
    %40 = vector.shape_cast %39 : vector<4x2x16x16xf32> to vector<4x1x2x16x16xf32>
    %41 = arith.addf %37, %40 : vector<4x1x2x16x16xf32>
    %c0_10 = arith.constant 0 : index
    %c0_11 = arith.constant 0 : index
    %c0_12 = arith.constant 0 : index
    %42 = vector.load %arg7[%c0_10, %c0_11, %c0_12] : memref<2x16x16xf32, #tpu.memory_space<vmem>>, vector<2x16x16xf32>
    %43 = vector.shape_cast %42 : vector<2x16x16xf32> to vector<1x1x2x16x16xf32>
    %44 = vector.broadcast %43 : vector<1x1x2x16x16xf32> to vector<4x1x2x16x16xf32>
    %45 = arith.addf %41, %44 : vector<4x1x2x16x16xf32>
    %46 = vector.shape_cast %45 : vector<4x1x2x16x16xf32> to vector<8x16x16xf32>
    %cst_13 = arith.constant dense<0xFF800000> : vector<8x16xf32>
    %47 = vector.multi_reduction <maximumf>, %46, %cst_13 [2] : vector<8x16x16xf32> to vector<8x16xf32>
    %48 = vector.shape_cast %47 : vector<8x16xf32> to vector<8x16x1xf32>
    %49 = vector.broadcast %48 : vector<8x16x1xf32> to vector<8x16x16xf32>
    %50 = arith.subf %46, %49 : vector<8x16x16xf32>
    %51 = math.exp %50 : vector<8x16x16xf32>
    %cst_14 = arith.constant dense<0.000000e+00> : vector<8x16xf32>
    %52 = vector.multi_reduction <add>, %51, %cst_14 [2] : vector<8x16x16xf32> to vector<8x16xf32>
    %53 = vector.shape_cast %52 : vector<8x16xf32> to vector<8x16x1xf32>
    %54 = tpu.reciprocal %53 {approx = true} : vector<8x16x1xf32> -> vector<8x16x1xf32>
    %55 = vector.broadcast %54 : vector<8x16x1xf32> to vector<8x16x16xf32>
    %56 = arith.mulf %51, %55 : vector<8x16x16xf32>
    %57 = arith.truncf %56 : vector<8x16x16xf32> to vector<8x16x16xbf16>
    "tpu.trace_start"() <{level = 10 : i32, message = "bnm,bmd->bnd"}> : () -> ()
    %cst_15 = arith.constant dense<0.000000e+00> : vector<8x16x8xf32>
    %58 = tpu.matmul %57, %35, %cst_15 {dimension_numbers = #tpu.dot_dimension_numbers<[2], [1], [1], [2], [0, 0, 0, 1, 1, 2], [0], [0]>} : vector<8x16x16xbf16>, vector<8x16x8xbf16>, vector<8x16x8xf32> -> vector<8x16x8xf32>
    "tpu.trace_stop"() : () -> ()
    %59 = vector.shape_cast %58 : vector<8x16x8xf32> to vector<4x32x8xf32>
    %60 = vector.extract_strided_slice %59 {offsets = [0, 0, 0], sizes = [1, 32, 8], strides = [1, 1, 1]} : vector<4x32x8xf32> to vector<1x32x8xf32>
    %61 = vector.shape_cast %60 : vector<1x32x8xf32> to vector<32x8xf32>
    %62 = vector.extract_strided_slice %59 {offsets = [1, 0, 0], sizes = [1, 32, 8], strides = [1, 1, 1]} : vector<4x32x8xf32> to vector<1x32x8xf32>
    %63 = vector.shape_cast %62 : vector<1x32x8xf32> to vector<32x8xf32>
    %64 = vector.extract_strided_slice %59 {offsets = [2, 0, 0], sizes = [1, 32, 8], strides = [1, 1, 1]} : vector<4x32x8xf32> to vector<1x32x8xf32>
    %65 = vector.shape_cast %64 : vector<1x32x8xf32> to vector<32x8xf32>
    %66 = vector.extract_strided_slice %59 {offsets = [3, 0, 0], sizes = [1, 32, 8], strides = [1, 1, 1]} : vector<4x32x8xf32> to vector<1x32x8xf32>
    %67 = vector.shape_cast %66 : vector<1x32x8xf32> to vector<32x8xf32>
    %68 = tpu.concatenate %61, %63, %65, %67 in 1 : vector<32x8xf32>, vector<32x8xf32>, vector<32x8xf32>, vector<32x8xf32> -> vector<32x32xf32>
    %69 = arith.truncf %68 : vector<32x32xf32> to vector<32x32xbf16>
    %c0_16 = arith.constant 0 : index
    %c0_17 = arith.constant 0 : index
    %70 = vector.load %arg4[%c0_16, %c0_17] : memref<32x32xbf16, #tpu.memory_space<vmem>>, vector<32x32xbf16>
    %cst_18 = arith.constant dense<0.000000e+00> : vector<32x32xf32>
    %71 = tpu.matmul %69, %70, %cst_18 {dimension_numbers = #tpu.dot_dimension_numbers<[1], [0], [0], [1], [0, 0, 1, 1], [], []>} : vector<32x32xbf16>, vector<32x32xbf16>, vector<32x32xf32> -> vector<32x32xf32>
    %c0_19 = arith.constant 0 : index
    %c0_20 = arith.constant 0 : index
    %72 = vector.load %arg5[%c0_19, %c0_20] : memref<1x32xf32, #tpu.memory_space<vmem>>, vector<1x32xf32>
    %73 = vector.broadcast %72 : vector<1x32xf32> to vector<32x32xf32>
    %74 = arith.addf %71, %73 : vector<32x32xf32>
    %75 = arith.truncf %74 : vector<32x32xf32> to vector<32x32xbf16>
    %c0_21 = arith.constant 0 : index
    %c0_22 = arith.constant 0 : index
    %76 = vector.load %arg8[%c0_21, %c0_22] : memref<32x32xbf16, #tpu.memory_space<vmem>>, vector<32x32xbf16>
    tpu.vector_store %arg8[%c0_21, %c0_22], %75 {strides = array<i32>} : memref<32x32xbf16, #tpu.memory_space<vmem>>, vector<32x32xbf16>,
    return
  }
  func.func @transform_0(%arg0: i32) -> (i32, i32) {
    %c0_i32 = arith.constant 0 : i32
    %c0_i32_0 = arith.constant 0 : i32
    return %arg0, %c0_i32 : i32, i32
  }
  func.func @transform_1(%arg0: i32) -> (i32, i32) {
    %c0_i32 = arith.constant 0 : i32
    %c0_i32_0 = arith.constant 0 : i32
    %c0_i32_1 = arith.constant 0 : i32
    return %c0_i32, %c0_i32_0 : i32, i32
  }
  func.func @transform_2(%arg0: i32) -> (i32, i32) {
    %c0_i32 = arith.constant 0 : i32
    %c0_i32_0 = arith.constant 0 : i32
    %c0_i32_1 = arith.constant 0 : i32
    return %c0_i32, %c0_i32_0 : i32, i32
  }
  func.func @transform_3(%arg0: i32) -> (i32, i32) {
    %c0_i32 = arith.constant 0 : i32
    %c0_i32_0 = arith.constant 0 : i32
    %c0_i32_1 = arith.constant 0 : i32
    return %c0_i32, %c0_i32_0 : i32, i32
  }
  func.func @transform_4(%arg0: i32) -> (i32, i32) {
    %c0_i32 = arith.constant 0 : i32
    %c0_i32_0 = arith.constant 0 : i32
    %c0_i32_1 = arith.constant 0 : i32
    return %c0_i32, %c0_i32_0 : i32, i32
  }
  func.func @transform_5(%arg0: i32) -> (i32, i32, i32, i32) {
    %c0_i32 = arith.constant 0 : i32
    %c0_i32_0 = arith.constant 0 : i32
    %c0_i32_1 = arith.constant 0 : i32
    %c0_i32_2 = arith.constant 0 : i32
    %c0_i32_3 = arith.constant 0 : i32
    return %c0_i32, %c0_i32_0, %c0_i32_1, %c0_i32_2 : i32, i32, i32, i32
  }
  func.func @transform_6(%arg0: i32) -> (i32, i32, i32) {
    %c0_i32 = arith.constant 0 : i32
    %c0_i32_0 = arith.constant 0 : i32
    %c0_i32_1 = arith.constant 0 : i32
    %c0_i32_2 = arith.constant 0 : i32
    return %c0_i32, %c0_i32_0, %c0_i32_1 : i32, i32, i32
  }
  func.func @transform_7(%arg0: i32) -> (i32, i32) {
    %c0_i32 = arith.constant 0 : i32
    %c0_i32_0 = arith.constant 0 : i32
    return %arg0, %c0_i32 : i32, i32
  }
}

</mosaic_0001>

<llo_original>
// kernel: tpu_custom_call.1
$region0: #{tpu_custom_call.1}
  #allocation0 [shape = 'u32[]', space=smem, size = 0x4, offset = 0x4, fixed_abs, tag = 'smem constant byte address 0x4 - core index']
  #allocation1 [shape = 'u32[144,128]{1,0:T(1,128)}', space=vmem, size = 0x12000, scoped, tag = 'internal scratch']
  %s0 = inlined_call_operand.vmem [shape: bf16[64,32], index: 0, kind: input, shape index: {}]
  %s1 = inlined_call_operand.hbm [shape: bf16[32,96], index: 1, kind: input, shape index: {}]
  %s2 = inlined_call_operand.vmem [shape: f32[1,96], index: 2, kind: input, shape index: {}]
  %s3 = inlined_call_operand.hbm [shape: bf16[32,32], index: 3, kind: input, shape index: {}]
  %s4 = inlined_call_operand.vmem [shape: f32[1,32], index: 4, kind: input, shape index: {}]
  %s5 = inlined_call_operand.vmem [shape: bf16[4,2,16,16], index: 5, kind: input, shape index: {}]
  %s6 = inlined_call_operand.hbm [shape: f32[2,16,16], index: 6, kind: input, shape index: {}]
  %s7 = inlined_call_operand.vmem [shape: bf16[64,32], index: 7, kind: output, shape index: {}]
  %s8 = sld [smem:[#allocation0]]
  $region73: #{tpu_custom_call.1} parent=0
    _
  %s10 = ssub.s32 1, %s8
  %s11 = scalar_select 0, %s10, %s8
  $region1: #{tpu_custom_call.1} parent=0
    #allocation2 [shape = 'u8[8192]{0}', space=vmem, size = 0x2000, scoped, tag = 'input window, operand 1, single buffered']
    #allocation3 [shape = 's32[2]{0}', space=sflag, size = 0x8, scoped, tag = 'scoped memory for tpu_custom_call.1']
    #allocation4 [shape = 'u8[8192]{0}', space=vmem, size = 0x2000, scoped, tag = 'input window, operand 3, single buffered']
    #allocation5 [shape = 's32[1]{0}', space=sflag, size = 0x4, scoped, tag = 'scoped memory for tpu_custom_call.1']
    #allocation6 [shape = 'u8[16384]{0}', space=vmem, size = 0x4000, scoped, tag = 'input window, operand 6, single buffered']
    %12 = vsyncpa [#allocation3], 0
    %13 = vsyncpa [#allocation5], 0
    loop: start=0, step=1, limit=4
    $region2: #{tpu_custom_call.1} parent=1 // loop_pre_header
      _
    $region3: #{tpu_custom_call.1} parent=1 // loop_header
      %s15 = sphi 0, %s19
      %p16 = scmp.ge.s32.totalorder %s15, 4
      %s25 = sphi 0, %s27
      %s28 = sphi 0, %s25
      %s29 = sphi 0, %s28
      %s45 = sphi 0, %s29
      %s49 = sphi 0, %s49
      %s51 = sphi 0, %s49
      %s52 = sphi 0, %s51
      %s66 = sphi 0, %s52
      %s70 = sphi 0, %s70
      %s72 = sphi 0, %s70
      %s73 = sphi 0, %s72
      %s87 = sphi 0, %s73
      %s91 = sphi 0, %s91
      %s93 = sphi 0, %s91
      %s94 = sphi 0, %s93
      %s108 = sphi 0, %s94
      %s112 = sphi 0, %s112
      %s114 = sphi 0, %s112
      %s115 = sphi 0, %s114
      %s129 = sphi 0, %s115
      %s133 = sphi 0, %s133
      %s135 = sphi 0, %s133
      %s136 = sphi 0, %s135
      %s150 = sphi 0, %s136
      %s154 = sphi 0, %s154
      %s156 = sphi 0, %s154
      %s157 = sphi 0, %s156
      %s171 = sphi 0, %s157
      %s177 = sphi 0, %s179
      %s180 = sphi 0, %s177
      %s181 = sphi 0, %s180
      %s197 = sphi 0, %s181
    $region4: #{tpu_custom_call.1} parent=1 // loop_header_branch
      %18 = sbr.rel (%p16) target = $region8
    $region5: #{tpu_custom_call.1} parent=1 // loop_body
      %s20 = ssub.s32 %s15, 1
      %s21 = ssub.s32 %s15, 2
      %s22 = sadd.s32 %s15, 1
      %s23 = ssub.s32 %s15, %s22
      %p24 = scmp.eq.s32.totalorder %s23, 0
      %s26 = sadd.s32 %s25, 1
      %s27 = scalar_select %p24, %s25, %s26
      %p30 = pneg %p24
      %p31 = scmp.eq.s32.totalorder %s15, 1
      %p32 = por %p30, %p31
      %p33 = scmp.ne.s32.totalorder %s25, %s28
      %p34 = scmp.eq.s32.totalorder %s15, 0
      %p35 = por %p33, %p34
      %p36 = scmp.ne.s32.totalorder %s25, %s28
      %p37 = scmp.eq.s32.totalorder %s20, 1
      %p38 = por %p36, %p37
      %p39 = scmp.ne.s32.totalorder %s28, %s29
      %p40 = scmp.eq.s32.totalorder %s20, 0
      %p41 = por %p39, %p40
      %p42 = scmp.ne.s32.totalorder %s28, %s29
      %p43 = scmp.eq.s32.totalorder %s21, 1
      %p44 = por %p42, %p43
      %p46 = scmp.ne.s32.totalorder %s29, %s45
      %p47 = scmp.eq.s32.totalorder %s21, 0
      %p48 = por %p46, %p47
      %s50 = sadd.s32 %s49, 1
      %p53 = scmp.eq.s32.totalorder %s15, 1
      %p54 = scmp.ne.s32.totalorder %s49, %s51
      %p55 = scmp.eq.s32.totalorder %s15, 0
      %p56 = por %p54, %p55
      %p57 = scmp.ne.s32.totalorder %s49, %s51
      %p58 = scmp.eq.s32.totalorder %s20, 1
      %p59 = por %p57, %p58
      %p60 = scmp.ne.s32.totalorder %s51, %s52
      %p61 = scmp.eq.s32.totalorder %s20, 0
      %p62 = por %p60, %p61
      %p63 = scmp.ne.s32.totalorder %s51, %s52
      %p64 = scmp.eq.s32.totalorder %s21, 1
      %p65 = por %p63, %p64
      %p67 = scmp.ne.s32.totalorder %s52, %s66
      %p68 = scmp.eq.s32.totalorder %s21, 0
      %p69 = por %p67, %p68
      %s71 = sadd.s32 %s70, 1
      %p74 = scmp.eq.s32.totalorder %s15, 1
      %p75 = scmp.ne.s32.totalorder %s70, %s72
      %p76 = scmp.eq.s32.totalorder %s15, 0
      %p77 = por %p75, %p76
      %p78 = scmp.ne.s32.totalorder %s70, %s72
      %p79 = scmp.eq.s32.totalorder %s20, 1
      %p80 = por %p78, %p79
      %p81 = scmp.ne.s32.totalorder %s72, %s73
      %p82 = scmp.eq.s32.totalorder %s20, 0
      %p83 = por %p81, %p82
      %p84 = scmp.ne.s32.totalorder %s72, %s73
      %p85 = scmp.eq.s32.totalorder %s21, 1
      %p86 = por %p84, %p85
      %p88 = scmp.ne.s32.totalorder %s73, %s87
      %p89 = scmp.eq.s32.totalorder %s21, 0
      %p90 = por %p88, %p89
      %s92 = sadd.s32 %s91, 1
      %p95 = scmp.eq.s32.totalorder %s15, 1
      %p96 = scmp.ne.s32.totalorder %s91, %s93
      %p97 = scmp.eq.s32.totalorder %s15, 0
      %p98 = por %p96, %p97
      %p99 = scmp.ne.s32.totalorder %s91, %s93
      %p100 = scmp.eq.s32.totalorder %s20, 1
      %p101 = por %p99, %p100
      %p102 = scmp.ne.s32.totalorder %s93, %s94
      %p103 = scmp.eq.s32.totalorder %s20, 0
      %p104 = por %p102, %p103
      %p105 = scmp.ne.s32.totalorder %s93, %s94
      %p106 = scmp.eq.s32.totalorder %s21, 1
      %p107 = por %p105, %p106
      %p109 = scmp.ne.s32.totalorder %s94, %s108
      %p110 = scmp.eq.s32.totalorder %s21, 0
      %p111 = por %p109, %p110
      %s113 = sadd.s32 %s112, 1
      %p116 = scmp.eq.s32.totalorder %s15, 1
      %p117 = scmp.ne.s32.totalorder %s112, %s114
      %p118 = scmp.eq.s32.totalorder %s15, 0
      %p119 = por %p117, %p118
      %p120 = scmp.ne.s32.totalorder %s112, %s114
      %p121 = scmp.eq.s32.totalorder %s20, 1
      %p122 = por %p120, %p121
      %p123 = scmp.ne.s32.totalorder %s114, %s115
      %p124 = scmp.eq.s32.totalorder %s20, 0
      %p125 = por %p123, %p124
      %p126 = scmp.ne.s32.totalorder %s114, %s115
      %p127 = scmp.eq.s32.totalorder %s21, 1
      %p128 = por %p126, %p127
      %p130 = scmp.ne.s32.totalorder %s115, %s129
      %p131 = scmp.eq.s32.totalorder %s21, 0
      %p132 = por %p130, %p131
      %s134 = sadd.s32 %s133, 1
      %p137 = scmp.eq.s32.totalorder %s15, 1
      %p138 = scmp.ne.s32.totalorder %s133, %s135
      %p139 = scmp.eq.s32.totalorder %s15, 0
      %p140 = por %p138, %p139
      %p141 = scmp.ne.s32.totalorder %s133, %s135
      %p142 = scmp.eq.s32.totalorder %s20, 1
      %p143 = por %p141, %p142
      %p144 = scmp.ne.s32.totalorder %s135, %s136
      %p145 = scmp.eq.s32.totalorder %s20, 0
      %p146 = por %p144, %p145
      %p147 = scmp.ne.s32.totalorder %s135, %s136
      %p148 = scmp.eq.s32.totalorder %s21, 1
      %p149 = por %p147, %p148
      %p151 = scmp.ne.s32.totalorder %s136, %s150
      %p152 = scmp.eq.s32.totalorder %s21, 0
      %p153 = por %p151, %p152
      %s155 = sadd.s32 %s154, 1
      %p158 = scmp.eq.s32.totalorder %s15, 1
      %p159 = scmp.ne.s32.totalorder %s154, %s156
      %p160 = scmp.eq.s32.totalorder %s15, 0
      %p161 = por %p159, %p160
      %p162 = scmp.ne.s32.totalorder %s154, %s156
      %p163 = scmp.eq.s32.totalorder %s20, 1
      %p164 = por %p162, %p163
      %p165 = scmp.ne.s32.totalorder %s156, %s157
      %p166 = scmp.eq.s32.totalorder %s20, 0
      %p167 = por %p165, %p166
      %p168 = scmp.ne.s32.totalorder %s156, %s157
      %p169 = scmp.eq.s32.totalorder %s21, 1
      %p170 = por %p168, %p169
      %p172 = scmp.ne.s32.totalorder %s157, %s171
      %p173 = scmp.eq.s32.totalorder %s21, 0
      %p174 = por %p172, %p173
      %s175 = ssub.s32 %s15, %s22
      %p176 = scmp.eq.s32.totalorder %s175, 0
      %s178 = sadd.s32 %s177, 1
      %s179 = scalar_select %p176, %s177, %s178
      %p182 = pneg %p176
      %p183 = scmp.eq.s32.totalorder %s15, 1
      %p184 = por %p182, %p183
      %p185 = scmp.ne.s32.totalorder %s177, %s180
      %p186 = scmp.eq.s32.totalorder %s15, 0
      %p187 = por %p185, %p186
      %p188 = scmp.ne.s32.totalorder %s177, %s180
      %p189 = scmp.eq.s32.totalorder %s20, 1
      %p190 = por %p188, %p189
      %p191 = scmp.ne.s32.totalorder %s180, %s181
      %p192 = scmp.eq.s32.totalorder %s20, 0
      %p193 = por %p191, %p192
      %p194 = scmp.ne.s32.totalorder %s180, %s181
      %p195 = scmp.eq.s32.totalorder %s21, 1
      %p196 = por %p194, %p195
      %p198 = scmp.ne.s32.totalorder %s181, %s197
      %p199 = scmp.eq.s32.totalorder %s21, 0
      %p200 = por %p198, %p199
      %p201 = scmp.le.s32.totalorder 1, %s15
      %p202 = scmp.lt.s32.totalorder %s15, 3
      %p203 = pnand %p201, %p202
      %p204 = pneg %p203
      // Predicated region
      $region9: #{tpu_custom_call.1} parent=5 // pred_check
        _
      $region10: #{tpu_custom_call.1} parent=5 // pred_check_branch
        %206 = sbr.rel (%p203) target = $region12
      $region11: #{tpu_custom_call.1} parent=5 // pred_region
        %s207 = ssub.s32 %s15, 1
        // Predicated region
        $region13: #{tpu_custom_call.1} parent=11 // pred_check
          %p208 = pneg %p62
        $region14: #{tpu_custom_call.1} parent=11 // pred_check_branch
          %210 = sbr.rel (%p208) target = $region16
        $region15: #{tpu_custom_call.1} parent=11 // pred_region
          %s212 = ssub.s32 256, 256
          %213 = vsyncadd [#allocation3], %s212
          %s214 = sshll.u32 [#allocation2], 4
          %s215 = int_to_ptr.vmem [resolvable:$true] %s214
          %220 = dma.hbm_to_vmem [thread:$0]  %s1, 256, %s215, [#allocation3], 64, 64, 4
        $region16: #{tpu_custom_call.1} parent=11 // pred_fallthru
          _
        // Predicated region
        $region17: #{tpu_custom_call.1} parent=11 // pred_check
          %p221 = pneg %p83
        $region18: #{tpu_custom_call.1} parent=11 // pred_check_branch
          %223 = sbr.rel (%p221) target = $region20
        $region19: #{tpu_custom_call.1} parent=11 // pred_region
          _
        $region20: #{tpu_custom_call.1} parent=11 // pred_fallthru
          _
        // Predicated region
        $region21: #{tpu_custom_call.1} parent=11 // pred_check
          %p224 = pneg %p104
        $region22: #{tpu_custom_call.1} parent=11 // pred_check_branch
          %226 = sbr.rel (%p224) target = $region24
        $region23: #{tpu_custom_call.1} parent=11 // pred_region
          %s228 = ssub.s32 256, 256
          %229 = vsyncadd [#allocation5], %s228
          %s230 = sshll.u32 [#allocation4], 4
          %s231 = int_to_ptr.vmem [resolvable:$true] %s230
          %236 = dma.hbm_to_vmem [thread:$0]  %s3, 256, %s231, [#allocation5], 64, 64, 4
        $region24: #{tpu_custom_call.1} parent=11 // pred_fallthru
          _
        // Predicated region
        $region25: #{tpu_custom_call.1} parent=11 // pred_check
          %p237 = pneg %p125
        $region26: #{tpu_custom_call.1} parent=11 // pred_check_branch
          %239 = sbr.rel (%p237) target = $region28
        $region27: #{tpu_custom_call.1} parent=11 // pred_region
          _
        $region28: #{tpu_custom_call.1} parent=11 // pred_fallthru
          _
        // Predicated region
        $region29: #{tpu_custom_call.1} parent=11 // pred_check
          %p240 = pneg %p146
        $region30: #{tpu_custom_call.1} parent=11 // pred_check_branch
          %242 = sbr.rel (%p240) target = $region32
        $region31: #{tpu_custom_call.1} parent=11 // pred_region
          _
        $region32: #{tpu_custom_call.1} parent=11 // pred_fallthru
          _
        // Predicated region
        $region33: #{tpu_custom_call.1} parent=11 // pred_check
          %p243 = pneg %p167
        $region34: #{tpu_custom_call.1} parent=11 // pred_check_branch
          %245 = sbr.rel (%p243) target = $region36
        $region35: #{tpu_custom_call.1} parent=11 // pred_region
          %s247 = ssub.s32 512, 512
          %248 = vsyncadd [#allocation5], %s247
          %s249 = sshll.u32 [#allocation6], 4
          %s250 = int_to_ptr.vmem [resolvable:$true] %s249
          %255 = dma.hbm_to_vmem [thread:$0]  %s6, 512, %s250, [#allocation5], 128, 128, 8
        $region36: #{tpu_custom_call.1} parent=11 // pred_fallthru
          _
      $region12: #{tpu_custom_call.1} parent=5 // pred_fallthru
        _
      %p256 = scmp.lt.s32.totalorder %s15, 2
      // Predicated region
      $region37: #{tpu_custom_call.1} parent=5 // pred_check
        %p257 = pneg %p256
      $region38: #{tpu_custom_call.1} parent=5 // pred_check_branch
        %259 = sbr.rel (%p257) target = $region40
      $region39: #{tpu_custom_call.1} parent=5 // pred_region
        // Predicated region
        $region41: #{tpu_custom_call.1} parent=39 // pred_check
          %p260 = pneg %p35
        $region42: #{tpu_custom_call.1} parent=39 // pred_check_branch
          %262 = sbr.rel (%p260) target = $region44
        $region43: #{tpu_custom_call.1} parent=39 // pred_region
          %s263 = smul.u32 4, %s15
          %p264 = scmp.lt.s32.totalorder %s263, 7
          %s265 = scalar_select %p264, %s263, 7
          %s266 = smul.addr %s265, 4
          %s267 = scalar_lea.vmem %s0, %s266
          %s268 = smul.u32 4, %s15
        $region44: #{tpu_custom_call.1} parent=39 // pred_fallthru
          _
      $region40: #{tpu_custom_call.1} parent=5 // pred_fallthru
        _
      %p269 = scmp.le.s32.totalorder 1, %s15
      %p270 = scmp.lt.s32.totalorder %s15, 3
      %p271 = pnand %p269, %p270
      %p272 = pneg %p271
      // Predicated region
      $region45: #{tpu_custom_call.1} parent=5 // pred_check
        _
      $region46: #{tpu_custom_call.1} parent=5 // pred_check_branch
        %274 = sbr.rel (%p271) target = $region48
      $region47: #{tpu_custom_call.1} parent=5 // pred_region
        %s275 = ssub.s32 %s15, 1
        // Predicated region
        $region49: #{tpu_custom_call.1} parent=47 // pred_check
          %p276 = pneg %p62
        $region50: #{tpu_custom_call.1} parent=47 // pred_check_branch
          %278 = sbr.rel (%p276) target = $region52
        $region51: #{tpu_custom_call.1} parent=47 // pred_region
          %279 = dma.done [#allocation3], 256
        $region52: #{tpu_custom_call.1} parent=47 // pred_fallthru
          _
        // Predicated region
        $region53: #{tpu_custom_call.1} parent=47 // pred_check
          %p280 = pneg %p104
        $region54: #{tpu_custom_call.1} parent=47 // pred_check_branch
          %282 = sbr.rel (%p280) target = $region56
        $region55: #{tpu_custom_call.1} parent=47 // pred_region
          %283 = dma.done [#allocation5], 256
        $region56: #{tpu_custom_call.1} parent=47 // pred_fallthru
          _
        // Predicated region
        $region57: #{tpu_custom_call.1} parent=47 // pred_check
          %p284 = pneg %p167
        $region58: #{tpu_custom_call.1} parent=47 // pred_check_branch
          %286 = sbr.rel (%p284) target = $region60
        $region59: #{tpu_custom_call.1} parent=47 // pred_region
          %287 = dma.done [#allocation5], 512
        $region60: #{tpu_custom_call.1} parent=47 // pred_fallthru
          _
        %s288 = smul.u32 4, %s20
        %p289 = scmp.lt.s32.totalorder %s288, 7
        %s290 = scalar_select %p289, %s288, 7
        %s291 = smul.addr %s290, 4
        %s292 = scalar_lea.vmem %s0, %s291
        %p293 = pneg %p41
        %p294 = pneg %p38
        %p295 = pneg %p62
        %p296 = pneg %p59
        %p297 = pneg %p83
        %p298 = pneg %p80
        %p299 = pneg %p104
        %p300 = pneg %p101
        %p301 = pneg %p125
        %p302 = pneg %p122
        %p303 = pneg %p146
        %p304 = pneg %p143
        %p305 = pneg %p167
        %p306 = pneg %p164
        %p307 = pneg %p193
        %p308 = pneg %p190
        %s309 = smul.u32 4, %s20
        %p310 = scmp.lt.s32.totalorder %s309, 7
        %s311 = scalar_select %p310, %s309, 7
        %s312 = smul.addr %s311, 4
        %s313 = scalar_lea.vmem %s7, %s312
        %s314 = smul.u32 4, %s20
        %p315 = scmp.lt.s32.totalorder %s314, 7
        %s316 = scalar_select %p315, %s314, 7
        %s317 = smul.addr %s316, 4
        %s318 = scalar_lea.vmem %s0, %s317
        %s319 = smul.u32 4, %s20
        %s320 = smul.u32 4, %s20
        %p321 = scmp.lt.s32.totalorder %s320, 7
        %s322 = scalar_select %p321, %s320, 7
        %s323 = smul.addr %s322, 4
        %s324 = scalar_lea.vmem %s7, %s323
        %s325 = smul.u32 4, %s20
        %v327 = vld [vmem:[%s318] sm:$0xf]
        %v328 = vld [vmem:[%s318 + $0x4] sm:$0xf]
        %v329 = vld [vmem:[%s318 + $0x8] sm:$0xf]
        %v330 = vld [vmem:[%s318 + $0xc] sm:$0xf]
        %v331 = vld [vmem:[#allocation2] sm:$0xf]
        %v332 = vld [vmem:[#allocation2 + $0x4] sm:$0xf]
        %v333 = vld [vmem:[#allocation2 + $0x8] sm:$0xf]
        %v334 = vld [vmem:[#allocation2 + $0xc] sm:$0xf]
        %v335 = vld [vmem:[%s2] sm:$0x1]
        %v337 = vlaneseq
        %v338 = vshrl.u32 %v337, 7
        %v339 = vsub.s32 0, %v338
        %v340 = vrot.slane %v335, %v339
        %v346 = vunpack.c.l.b16 %v327
        %v347 = vunpack.c.l.b16 %v328
        %v348 = vunpack.c.l.b16 %v329
        %v349 = vunpack.c.l.b16 %v330
        %v350 = vpack.c.b16 %v347, %v346
        %v351 = vpack.c.b16 %v349, %v348
        %v356 = vunpack.c.l.b16 %v331
        %v357 = vunpack.c.l.b16 %v332
        %v358 = vunpack.c.l.b16 %v333
        %v359 = vunpack.c.l.b16 %v334
        %v360 = vpack.c.b16 %v357, %v356
        %v361 = vpack.c.b16 %v359, %v358
        %vm364 = vcmask 261120
        %v366 = vsel %vm364, %v350, 0
        %v369 = vsel %vm364, %v351, 0
        %371 = vmatprep.subr.bf16.mxu0 0
        %372 = vmatpush1.bf16.msra.mxu0 %v360
        %373 = vmatprep.subr.bf16.mxu0 0
        %374 = vmatpush1.bf16.msra.mxu0 %v361
        %375 = vmatprep.subr.bf16.mxu0 0
        %376 = vmatpush1.bf16.msra.mxu0 0
        %377 = vmatprep.subr.bf16.mxu0 0
        %378 = vmatpush1.bf16.msra.mxu0 0
        %379 = vmatprep.subr.bf16.mxu0 0
        %380 = vmatpush1.bf16.msra.mxu0 0
        %381 = vmatprep.subr.bf16.mxu0 0
        %382 = vmatpush1.bf16.msra.mxu0 0
        %383 = vmatprep.subr.bf16.mxu0 0
        %384 = vmatpush1.bf16.msra.mxu0 0
        %385 = vmatprep.subr.bf16.mxu0 0
        %386 = vmatpush1.bf16.msra.mxu0 0
        %387 = vmatprep.subr.bf16.mxu0 0
        %388 = vmatpush1.bf16.msra.mxu0 0
        %389 = vmatprep.subr.bf16.mxu0 0
        %390 = vmatpush1.bf16.msra.mxu0 0
        %391 = vmatprep.subr.bf16.mxu0 0
        %392 = vmatpush1.bf16.msra.mxu0 0
        %393 = vmatprep.subr.bf16.mxu0 0
        %394 = vmatpush1.bf16.msra.mxu0 0
        %395 = vmatprep.subr.bf16.mxu0 0
        %396 = vmatpush1.bf16.msra.mxu0 0
        %397 = vmatprep.subr.bf16.mxu0 0
        %398 = vmatpush1.bf16.msra.mxu0 0
        %399 = vmatprep.subr.bf16.mxu0 0
        %400 = vmatpush1.bf16.msra.mxu0 0
        %401 = vmatprep.subr.bf16.mxu0 0
        %402 = vmatpush1.bf16.msra.mxu0 0
        %403 = vmatprep.mubr.bf16.mxu0 0
        %404 = vmatmul.mubr.bf16.gmra.mrb[0].mxu0 %v366
        %v405 = vpop.f32.mrb[0].mxu0
        %v406 = vadd.f32 %v340, %v405
        %v407 = vpop.f32.mrb[0].mxu0
        %v408 = vpop.f32.mrb[0].mxu0
        %v409 = vadd.f32 %v340, %v408
        %v410 = vpop.f32.mrb[0].mxu0
        %411 = vmatprep.mubr.bf16.mxu0 0
        %412 = vmatmul.mubr.bf16.gmra.mrb[0].mxu0 %v369
        %v413 = vpop.f32.mrb[0].mxu0
        %v414 = vadd.f32 %v340, %v413
        %v415 = vpop.f32.mrb[0].mxu0
        %v416 = vpop.f32.mrb[0].mxu0
        %v417 = vadd.f32 %v340, %v416
        %v418 = vpop.f32.mrb[0].mxu0
        %419 = vdwg.mxu0
        %424 = vrot.lane.b32.xlu0 %v406, 120
        %v425 = vpop.permute.xlu0 %424
        %426 = vrot.lane.b32.xlu0 %v409, 120
        %v427 = vpop.permute.xlu0 %426
        %428 = vrot.lane.b32.xlu0 %v414, 120
        %v429 = vpop.permute.xlu0 %428
        %430 = vrot.lane.b32.xlu0 %v417, 120
        %v431 = vpop.permute.xlu0 %430
        %436 = vrot.lane.b32.xlu0 %v406, 112
        %v437 = vpop.permute.xlu0 %436
        %438 = vrot.lane.b32.xlu0 %v409, 112
        %v439 = vpop.permute.xlu0 %438
        %440 = vrot.lane.b32.xlu0 %v414, 112
        %v441 = vpop.permute.xlu0 %440
        %442 = vrot.lane.b32.xlu0 %v417, 112
        %v443 = vpop.permute.xlu0 %442
        %448 = vrot.lane.b32.xlu0 %v406, 104
        %v449 = vpop.permute.xlu0 %448
        %450 = vrot.lane.b32.xlu0 %v409, 104
        %v451 = vpop.permute.xlu0 %450
        %452 = vrot.lane.b32.xlu0 %v414, 104
        %v453 = vpop.permute.xlu0 %452
        %454 = vrot.lane.b32.xlu0 %v417, 104
        %v455 = vpop.permute.xlu0 %454
        %v460 = vpack.c.bf16 %v409, %v406
        %v461 = vpack.c.bf16 %v417, %v414
        %v462 = vpack.c.bf16 %v427, %v425
        %v463 = vpack.c.bf16 %v431, %v429
        %v464 = vpack.c.bf16 %v439, %v437
        %v465 = vpack.c.bf16 %v443, %v441
        %v466 = vpack.c.bf16 %v451, %v449
        %v467 = vpack.c.bf16 %v455, %v453
        %469 = vrot.lane.b32.xlu0 %v460, 96
        %v470 = vpop.permute.xlu0 %469
        %vm471 = vcmask 64512
        %v473 = vsel %vm471, %v460, 0
        %v476 = vsel %vm471, %v470, 0
        %478 = vmatprep.subr.bf16.mxu0 0
        %479 = vmatpush1.bf16.xpose.msra.mxu0 %v476
        %480 = vmatprep.subr.bf16.mxu0 0
        %481 = vmatpush1.bf16.xpose.msra.mxu0 0
        %482 = vmatprep.subr.bf16.mxu0 0
        %483 = vmatpush1.bf16.xpose.msra.mxu0 0
        %484 = vmatprep.subr.bf16.mxu0 0
        %485 = vmatpush1.bf16.xpose.msra.mxu0 0
        %486 = vmatprep.subr.bf16.mxu0 0
        %487 = vmatpush1.bf16.xpose.msra.mxu0 0
        %488 = vmatprep.subr.bf16.mxu0 0
        %489 = vmatpush1.bf16.xpose.msra.mxu0 0
        %490 = vmatprep.subr.bf16.mxu0 0
        %491 = vmatpush1.bf16.xpose.msra.mxu0 0
        %492 = vmatprep.subr.bf16.mxu0 0
        %493 = vmatpush1.bf16.xpose.msra.mxu0 0
        %494 = vmatprep.subr.bf16.mxu0 0
        %495 = vmatpush1.bf16.xpose.msra.mxu0 0
        %496 = vmatprep.subr.bf16.mxu0 0
        %497 = vmatpush1.bf16.xpose.msra.mxu0 0
        %498 = vmatprep.subr.bf16.mxu0 0
        %499 = vmatpush1.bf16.xpose.msra.mxu0 0
        %500 = vmatprep.subr.bf16.mxu0 0
        %501 = vmatpush1.bf16.xpose.msra.mxu0 0
        %502 = vmatprep.subr.bf16.mxu0 0
        %503 = vmatpush1.bf16.xpose.msra.mxu0 0
        %504 = vmatprep.subr.bf16.mxu0 0
        %505 = vmatpush1.bf16.xpose.msra.mxu0 0
        %506 = vmatprep.subr.bf16.mxu0 0
        %507 = vmatpush1.bf16.xpose.msra.mxu0 0
        %508 = vmatprep.subr.bf16.mxu0 0
        %509 = vmatpush1.bf16.xpose.msra.mxu0 0
        %510 = vmatprep.mubr.bf16.mxu0 0
        %511 = vmatmul.mubr.bf16.gmra.mrb[0].mxu0 %v473
        %v512 = vpop.f32.mrb[0].mxu0
        %v513 = vadd.f32 0.0, %v512
        %v514 = vpop.f32.mrb[0].mxu0
        %v515 = vpop.f32.mrb[0].mxu0
        %v516 = vadd.f32 0.0, %v515
        %v517 = vpop.f32.mrb[0].mxu0
        %518 = vdwg.mxu0
        %520 = vrot.lane.b32.xlu0 %v461, 96
        %v521 = vpop.permute.xlu0 %520
        %v523 = vsel %vm471, %v461, 0
        %v526 = vsel %vm471, %v521, 0
        %528 = vmatprep.subr.bf16.mxu0 0
        %529 = vmatpush1.bf16.xpose.msra.mxu0 %v526
        %530 = vmatprep.subr.bf16.mxu0 0
        %531 = vmatpush1.bf16.xpose.msra.mxu0 0
        %532 = vmatprep.subr.bf16.mxu0 0
        %533 = vmatpush1.bf16.xpose.msra.mxu0 0
        %534 = vmatprep.subr.bf16.mxu0 0
        %535 = vmatpush1.bf16.xpose.msra.mxu0 0
        %536 = vmatprep.subr.bf16.mxu0 0
        %537 = vmatpush1.bf16.xpose.msra.mxu0 0
        %538 = vmatprep.subr.bf16.mxu0 0
        %539 = vmatpush1.bf16.xpose.msra.mxu0 0
        %540 = vmatprep.subr.bf16.mxu0 0
        %541 = vmatpush1.bf16.xpose.msra.mxu0 0
        %542 = vmatprep.subr.bf16.mxu0 0
        %543 = vmatpush1.bf16.xpose.msra.mxu0 0
        %544 = vmatprep.subr.bf16.mxu0 0
        %545 = vmatpush1.bf16.xpose.msra.mxu0 0
        %546 = vmatprep.subr.bf16.mxu0 0
        %547 = vmatpush1.bf16.xpose.msra.mxu0 0
        %548 = vmatprep.subr.bf16.mxu0 0
        %549 = vmatpush1.bf16.xpose.msra.mxu0 0
        %550 = vmatprep.subr.bf16.mxu0 0
        %551 = vmatpush1.bf16.xpose.msra.mxu0 0
        %552 = vmatprep.subr.bf16.mxu0 0
        %553 = vmatpush1.bf16.xpose.msra.mxu0 0
        %554 = vmatprep.subr.bf16.mxu0 0
        %555 = vmatpush1.bf16.xpose.msra.mxu0 0
        %556 = vmatprep.subr.bf16.mxu0 0
        %557 = vmatpush1.bf16.xpose.msra.mxu0 0
        %558 = vmatprep.subr.bf16.mxu0 0
        %559 = vmatpush1.bf16.xpose.msra.mxu0 0
        %560 = vmatprep.mubr.bf16.mxu0 0
        %561 = vmatmul.mubr.bf16.gmra.mrb[0].mxu0 %v523
        %v562 = vpop.f32.mrb[0].mxu0
        %v563 = vadd.f32 0.0, %v562
        %v564 = vpop.f32.mrb[0].mxu0
        %v565 = vpop.f32.mrb[0].mxu0
        %v566 = vadd.f32 0.0, %v565
        %v567 = vpop.f32.mrb[0].mxu0
        %568 = vdwg.mxu0
        %570 = vrot.lane.b32.xlu0 %v462, 96
        %v571 = vpop.permute.xlu0 %570
        %v573 = vsel %vm471, %v462, 0
        %v576 = vsel %vm471, %v571, 0
        %578 = vmatprep.subr.bf16.mxu0 0
        %579 = vmatpush1.bf16.xpose.msra.mxu0 %v576
        %580 = vmatprep.subr.bf16.mxu0 0
        %581 = vmatpush1.bf16.xpose.msra.mxu0 0
        %582 = vmatprep.subr.bf16.mxu0 0
        %583 = vmatpush1.bf16.xpose.msra.mxu0 0
        %584 = vmatprep.subr.bf16.mxu0 0
        %585 = vmatpush1.bf16.xpose.msra.mxu0 0
        %586 = vmatprep.subr.bf16.mxu0 0
        %587 = vmatpush1.bf16.xpose.msra.mxu0 0
        %588 = vmatprep.subr.bf16.mxu0 0
        %589 = vmatpush1.bf16.xpose.msra.mxu0 0
        %590 = vmatprep.subr.bf16.mxu0 0
        %591 = vmatpush1.bf16.xpose.msra.mxu0 0
        %592 = vmatprep.subr.bf16.mxu0 0
        %593 = vmatpush1.bf16.xpose.msra.mxu0 0
        %594 = vmatprep.subr.bf16.mxu0 0
        %595 = vmatpush1.bf16.xpose.msra.mxu0 0
        %596 = vmatprep.subr.bf16.mxu0 0
        %597 = vmatpush1.bf16.xpose.msra.mxu0 0
        %598 = vmatprep.subr.bf16.mxu0 0
        %599 = vmatpush1.bf16.xpose.msra.mxu0 0
        %600 = vmatprep.subr.bf16.mxu0 0
        %601 = vmatpush1.bf16.xpose.msra.mxu0 0
        %602 = vmatprep.subr.bf16.mxu0 0
        %603 = vmatpush1.bf16.xpose.msra.mxu0 0
        %604 = vmatprep.subr.bf16.mxu0 0
        %605 = vmatpush1.bf16.xpose.msra.mxu0 0
        %606 = vmatprep.subr.bf16.mxu0 0
        %607 = vmatpush1.bf16.xpose.msra.mxu0 0
        %608 = vmatprep.subr.bf16.mxu0 0
        %609 = vmatpush1.bf16.xpose.msra.mxu0 0
        %610 = vmatprep.mubr.bf16.mxu0 0
        %611 = vmatmul.mubr.bf16.gmra.mrb[0].mxu0 %v573
        %v612 = vpop.f32.mrb[0].mxu0
        %v613 = vadd.f32 0.0, %v612
        %v614 = vpop.f32.mrb[0].mxu0
        %v615 = vpop.f32.mrb[0].mxu0
        %v616 = vadd.f32 0.0, %v615
        %v617 = vpop.f32.mrb[0].mxu0
        %618 = vdwg.mxu0
        %620 = vrot.lane.b32.xlu0 %v463, 96
        %v621 = vpop.permute.xlu0 %620
        %v623 = vsel %vm471, %v463, 0
        %v626 = vsel %vm471, %v621, 0
        %628 = vmatprep.subr.bf16.mxu0 0
        %629 = vmatpush1.bf16.xpose.msra.mxu0 %v626
        %630 = vmatprep.subr.bf16.mxu0 0
        %631 = vmatpush1.bf16.xpose.msra.mxu0 0
        %632 = vmatprep.subr.bf16.mxu0 0
        %633 = vmatpush1.bf16.xpose.msra.mxu0 0
        %634 = vmatprep.subr.bf16.mxu0 0
        %635 = vmatpush1.bf16.xpose.msra.mxu0 0
        %636 = vmatprep.subr.bf16.mxu0 0
        %637 = vmatpush1.bf16.xpose.msra.mxu0 0
        %638 = vmatprep.subr.bf16.mxu0 0
        %639 = vmatpush1.bf16.xpose.msra.mxu0 0
        %640 = vmatprep.subr.bf16.mxu0 0
        %641 = vmatpush1.bf16.xpose.msra.mxu0 0
        %642 = vmatprep.subr.bf16.mxu0 0
        %643 = vmatpush1.bf16.xpose.msra.mxu0 0
        %644 = vmatprep.subr.bf16.mxu0 0
        %645 = vmatpush1.bf16.xpose.msra.mxu0 0
        %646 = vmatprep.subr.bf16.mxu0 0
        %647 = vmatpush1.bf16.xpose.msra.mxu0 0
        %648 = vmatprep.subr.bf16.mxu0 0
        %649 = vmatpush1.bf16.xpose.msra.mxu0 0
        %650 = vmatprep.subr.bf16.mxu0 0
        %651 = vmatpush1.bf16.xpose.msra.mxu0 0
        %652 = vmatprep.subr.bf16.mxu0 0
        %653 = vmatpush1.bf16.xpose.msra.mxu0 0
        %654 = vmatprep.subr.bf16.mxu0 0
        %655 = vmatpush1.bf16.xpose.msra.mxu0 0
        %656 = vmatprep.subr.bf16.mxu0 0
        %657 = vmatpush1.bf16.xpose.msra.mxu0 0
        %658 = vmatprep.subr.bf16.mxu0 0
        %659 = vmatpush1.bf16.xpose.msra.mxu0 0
        %660 = vmatprep.mubr.bf16.mxu0 0
        %661 = vmatmul.mubr.bf16.gmra.mrb[0].mxu0 %v623
        %v662 = vpop.f32.mrb[0].mxu0
        %v663 = vadd.f32 0.0, %v662
        %v664 = vpop.f32.mrb[0].mxu0
        %v665 = vpop.f32.mrb[0].mxu0
        %v666 = vadd.f32 0.0, %v665
        %v667 = vpop.f32.mrb[0].mxu0
        %668 = vdwg.mxu0
        %670 = vrot.lane.b32.xlu0 %v464, 96
        %v671 = vpop.permute.xlu0 %670
        %v673 = vsel %vm471, %v464, 0
        %v676 = vsel %vm471, %v671, 0
        %678 = vmatprep.subr.bf16.mxu0 0
        %679 = vmatpush1.bf16.xpose.msra.mxu0 %v676
        %680 = vmatprep.subr.bf16.mxu0 0
        %681 = vmatpush1.bf16.xpose.msra.mxu0 0
        %682 = vmatprep.subr.bf16.mxu0 0
        %683 = vmatpush1.bf16.xpose.msra.mxu0 0
        %684 = vmatprep.subr.bf16.mxu0 0
        %685 = vmatpush1.bf16.xpose.msra.mxu0 0
        %686 = vmatprep.subr.bf16.mxu0 0
        %687 = vmatpush1.bf16.xpose.msra.mxu0 0
        %688 = vmatprep.subr.bf16.mxu0 0
        %689 = vmatpush1.bf16.xpose.msra.mxu0 0
        %690 = vmatprep.subr.bf16.mxu0 0
        %691 = vmatpush1.bf16.xpose.msra.mxu0 0
        %692 = vmatprep.subr.bf16.mxu0 0
        %693 = vmatpush1.bf16.xpose.msra.mxu0 0
        %694 = vmatprep.subr.bf16.mxu0 0
        %695 = vmatpush1.bf16.xpose.msra.mxu0 0
        %696 = vmatprep.subr.bf16.mxu0 0
        %697 = vmatpush1.bf16.xpose.msra.mxu0 0
        %698 = vmatprep.subr.bf16.mxu0 0
        %699 = vmatpush1.bf16.xpose.msra.mxu0 0
        %700 = vmatprep.subr.bf16.mxu0 0
        %701 = vmatpush1.bf16.xpose.msra.mxu0 0
        %702 = vmatprep.subr.bf16.mxu0 0
        %703 = vmatpush1.bf16.xpose.msra.mxu0 0
        %704 = vmatprep.subr.bf16.mxu0 0
        %705 = vmatpush1.bf16.xpose.msra.mxu0 0
        %706 = vmatprep.subr.bf16.mxu0 0
        %707 = vmatpush1.bf16.xpose.msra.mxu0 0
        %708 = vmatprep.subr.bf16.mxu0 0
        %709 = vmatpush1.bf16.xpose.msra.mxu0 0
        %710 = vmatprep.mubr.bf16.mxu0 0
        %711 = vmatmul.mubr.bf16.gmra.mrb[0].mxu0 %v673
        %v712 = vpop.f32.mrb[0].mxu0
        %v713 = vadd.f32 0.0, %v712
        %v714 = vpop.f32.mrb[0].mxu0
        %v715 = vpop.f32.mrb[0].mxu0
        %v716 = vadd.f32 0.0, %v715
        %v717 = vpop.f32.mrb[0].mxu0
        %718 = vdwg.mxu0
        %720 = vrot.lane.b32.xlu0 %v465, 96
        %v721 = vpop.permute.xlu0 %720
        %v723 = vsel %vm471, %v465, 0
        %v726 = vsel %vm471, %v721, 0
        %728 = vmatprep.subr.bf16.mxu0 0
        %729 = vmatpush1.bf16.xpose.msra.mxu0 %v726
        %730 = vmatprep.subr.bf16.mxu0 0
        %731 = vmatpush1.bf16.xpose.msra.mxu0 0
        %732 = vmatprep.subr.bf16.mxu0 0
        %733 = vmatpush1.bf16.xpose.msra.mxu0 0
        %734 = vmatprep.subr.bf16.mxu0 0
        %735 = vmatpush1.bf16.xpose.msra.mxu0 0
        %736 = vmatprep.subr.bf16.mxu0 0
        %737 = vmatpush1.bf16.xpose.msra.mxu0 0
        %738 = vmatprep.subr.bf16.mxu0 0
        %739 = vmatpush1.bf16.xpose.msra.mxu0 0
        %740 = vmatprep.subr.bf16.mxu0 0
        %741 = vmatpush1.bf16.xpose.msra.mxu0 0
        %742 = vmatprep.subr.bf16.mxu0 0
        %743 = vmatpush1.bf16.xpose.msra.mxu0 0
        %744 = vmatprep.subr.bf16.mxu0 0
        %745 = vmatpush1.bf16.xpose.msra.mxu0 0
        %746 = vmatprep.subr.bf16.mxu0 0
        %747 = vmatpush1.bf16.xpose.msra.mxu0 0
        %748 = vmatprep.subr.bf16.mxu0 0
        %749 = vmatpush1.bf16.xpose.msra.mxu0 0
        %750 = vmatprep.subr.bf16.mxu0 0
        %751 = vmatpush1.bf16.xpose.msra.mxu0 0
        %752 = vmatprep.subr.bf16.mxu0 0
        %753 = vmatpush1.bf16.xpose.msra.mxu0 0
        %754 = vmatprep.subr.bf16.mxu0 0
        %755 = vmatpush1.bf16.xpose.msra.mxu0 0
        %756 = vmatprep.subr.bf16.mxu0 0
        %757 = vmatpush1.bf16.xpose.msra.mxu0 0
        %758 = vmatprep.subr.bf16.mxu0 0
        %759 = vmatpush1.bf16.xpose.msra.mxu0 0
        %760 = vmatprep.mubr.bf16.mxu0 0
        %761 = vmatmul.mubr.bf16.gmra.mrb[0].mxu0 %v723
        %v762 = vpop.f32.mrb[0].mxu0
        %v763 = vadd.f32 0.0, %v762
        %v764 = vpop.f32.mrb[0].mxu0
        %v765 = vpop.f32.mrb[0].mxu0
        %v766 = vadd.f32 0.0, %v765
        %v767 = vpop.f32.mrb[0].mxu0
        %768 = vdwg.mxu0
        %770 = vrot.lane.b32.xlu0 %v466, 96
        %v771 = vpop.permute.xlu0 %770
        %v773 = vsel %vm471, %v466, 0
        %v776 = vsel %vm471, %v771, 0
        %778 = vmatprep.subr.bf16.mxu0 0
        %779 = vmatpush1.bf16.xpose.msra.mxu0 %v776
        %780 = vmatprep.subr.bf16.mxu0 0
        %781 = vmatpush1.bf16.xpose.msra.mxu0 0
        %782 = vmatprep.subr.bf16.mxu0 0
        %783 = vmatpush1.bf16.xpose.msra.mxu0 0
        %784 = vmatprep.subr.bf16.mxu0 0
        %785 = vmatpush1.bf16.xpose.msra.mxu0 0
        %786 = vmatprep.subr.bf16.mxu0 0
        %787 = vmatpush1.bf16.xpose.msra.mxu0 0
        %788 = vmatprep.subr.bf16.mxu0 0
        %789 = vmatpush1.bf16.xpose.msra.mxu0 0
        %790 = vmatprep.subr.bf16.mxu0 0
        %791 = vmatpush1.bf16.xpose.msra.mxu0 0
        %792 = vmatprep.subr.bf16.mxu0 0
        %793 = vmatpush1.bf16.xpose.msra.mxu0 0
        %794 = vmatprep.subr.bf16.mxu0 0
        %795 = vmatpush1.bf16.xpose.msra.mxu0 0
        %796 = vmatprep.subr.bf16.mxu0 0
        %797 = vmatpush1.bf16.xpose.msra.mxu0 0
        %798 = vmatprep.subr.bf16.mxu0 0
        %799 = vmatpush1.bf16.xpose.msra.mxu0 0
        %800 = vmatprep.subr.bf16.mxu0 0
        %801 = vmatpush1.bf16.xpose.msra.mxu0 0
        %802 = vmatprep.subr.bf16.mxu0 0
        %803 = vmatpush1.bf16.xpose.msra.mxu0 0
        %804 = vmatprep.subr.bf16.mxu0 0
        %805 = vmatpush1.bf16.xpose.msra.mxu0 0
        %806 = vmatprep.subr.bf16.mxu0 0
        %807 = vmatpush1.bf16.xpose.msra.mxu0 0
        %808 = vmatprep.subr.bf16.mxu0 0
        %809 = vmatpush1.bf16.xpose.msra.mxu0 0
        %810 = vmatprep.mubr.bf16.mxu0 0
        %811 = vmatmul.mubr.bf16.gmra.mrb[0].mxu0 %v773
        %v812 = vpop.f32.mrb[0].mxu0
        %v813 = vadd.f32 0.0, %v812
        %v814 = vpop.f32.mrb[0].mxu0
        %v815 = vpop.f32.mrb[0].mxu0
        %v816 = vadd.f32 0.0, %v815
        %v817 = vpop.f32.mrb[0].mxu0
        %818 = vdwg.mxu0
        %820 = vrot.lane.b32.xlu0 %v467, 96
        %v821 = vpop.permute.xlu0 %820
        %v823 = vsel %vm471, %v467, 0
        %v826 = vsel %vm471, %v821, 0
        %828 = vmatprep.subr.bf16.mxu0 0
        %829 = vmatpush1.bf16.xpose.msra.mxu0 %v826
        %830 = vmatprep.subr.bf16.mxu0 0
        %831 = vmatpush1.bf16.xpose.msra.mxu0 0
        %832 = vmatprep.subr.bf16.mxu0 0
        %833 = vmatpush1.bf16.xpose.msra.mxu0 0
        %834 = vmatprep.subr.bf16.mxu0 0
        %835 = vmatpush1.bf16.xpose.msra.mxu0 0
        %836 = vmatprep.subr.bf16.mxu0 0
        %837 = vmatpush1.bf16.xpose.msra.mxu0 0
        %838 = vmatprep.subr.bf16.mxu0 0
        %839 = vmatpush1.bf16.xpose.msra.mxu0 0
        %840 = vmatprep.subr.bf16.mxu0 0
        %841 = vmatpush1.bf16.xpose.msra.mxu0 0
        %842 = vmatprep.subr.bf16.mxu0 0
        %843 = vmatpush1.bf16.xpose.msra.mxu0 0
        %844 = vmatprep.subr.bf16.mxu0 0
        %845 = vmatpush1.bf16.xpose.msra.mxu0 0
        %846 = vmatprep.subr.bf16.mxu0 0
        %847 = vmatpush1.bf16.xpose.msra.mxu0 0
        %848 = vmatprep.subr.bf16.mxu0 0
        %849 = vmatpush1.bf16.xpose.msra.mxu0 0
        %850 = vmatprep.subr.bf16.mxu0 0
        %851 = vmatpush1.bf16.xpose.msra.mxu0 0
        %852 = vmatprep.subr.bf16.mxu0 0
        %853 = vmatpush1.bf16.xpose.msra.mxu0 0
        %854 = vmatprep.subr.bf16.mxu0 0
        %855 = vmatpush1.bf16.xpose.msra.mxu0 0
        %856 = vmatprep.subr.bf16.mxu0 0
        %857 = vmatpush1.bf16.xpose.msra.mxu0 0
        %858 = vmatprep.subr.bf16.mxu0 0
        %859 = vmatpush1.bf16.xpose.msra.mxu0 0
        %860 = vmatprep.mubr.bf16.mxu0 0
        %861 = vmatmul.mubr.bf16.gmra.mrb[0].mxu0 %v823
        %v862 = vpop.f32.mrb[0].mxu0
        %v863 = vadd.f32 0.0, %v862
        %v864 = vpop.f32.mrb[0].mxu0
        %v865 = vpop.f32.mrb[0].mxu0
        %v866 = vadd.f32 0.0, %v865
        %v867 = vpop.f32.mrb[0].mxu0
        %868 = vdwg.mxu0
        %v869 = vld [vmem:[%s5] sm:$0xf]
        %v870 = vld [vmem:[%s5 + $0x4] sm:$0xf]
        %v871 = vld [vmem:[%s5 + $0x8] sm:$0xf]
        %v872 = vld [vmem:[%s5 + $0xc] sm:$0xf]
        %v873 = vld [vmem:[%s5 + $0x10] sm:$0xf]
        %v874 = vld [vmem:[%s5 + $0x14] sm:$0xf]
        %v875 = vld [vmem:[%s5 + $0x18] sm:$0xf]
        %v876 = vld [vmem:[%s5 + $0x1c] sm:$0xf]
        %v877 = vld [vmem:[%s5 + $0x20] sm:$0xf]
        %v878 = vld [vmem:[%s5 + $0x24] sm:$0xf]
        %v879 = vld [vmem:[%s5 + $0x28] sm:$0xf]
        %v880 = vld [vmem:[%s5 + $0x2c] sm:$0xf]
        %v881 = vld [vmem:[%s5 + $0x30] sm:$0xf]
        %v882 = vld [vmem:[%s5 + $0x34] sm:$0xf]
        %v883 = vld [vmem:[%s5 + $0x38] sm:$0xf]
        %v884 = vld [vmem:[%s5 + $0x3c] sm:$0xf]
        %v885 = vunpack.c.l.bf16 %v869
        %v886 = vunpack.c.l.bf16 %v870
        %v887 = vunpack.c.l.bf16 %v871
        %v888 = vunpack.c.l.bf16 %v872
        %v889 = vunpack.c.l.bf16 %v873
        %v890 = vunpack.c.l.bf16 %v874
        %v891 = vunpack.c.l.bf16 %v875
        %v892 = vunpack.c.l.bf16 %v876
        %v893 = vunpack.c.l.bf16 %v877
        %v894 = vunpack.c.l.bf16 %v878
        %v895 = vunpack.c.l.bf16 %v879
        %v896 = vunpack.c.l.bf16 %v880
        %v897 = vunpack.c.l.bf16 %v881
        %v898 = vunpack.c.l.bf16 %v882
        %v899 = vunpack.c.l.bf16 %v883
        %v900 = vunpack.c.l.bf16 %v884
        %v901 = vadd.f32 %v513, %v885
        %v902 = vadd.f32 %v516, %v886
        %v903 = vadd.f32 %v563, %v887
        %v904 = vadd.f32 %v566, %v888
        %v905 = vadd.f32 %v613, %v889
        %v906 = vadd.f32 %v616, %v890
        %v907 = vadd.f32 %v663, %v891
        %v908 = vadd.f32 %v666, %v892
        %v909 = vadd.f32 %v713, %v893
        %v910 = vadd.f32 %v716, %v894
        %v911 = vadd.f32 %v763, %v895
        %v912 = vadd.f32 %v766, %v896
        %v913 = vadd.f32 %v813, %v897
        %v914 = vadd.f32 %v816, %v898
        %v915 = vadd.f32 %v863, %v899
        %v916 = vadd.f32 %v866, %v900
        %v917 = vld [vmem:[#allocation6] sm:$0xff]
        %v918 = vld [vmem:[#allocation6 + $0x8] sm:$0xff]
        %v919 = vld [vmem:[#allocation6 + $0x10] sm:$0xff]
        %v920 = vld [vmem:[#allocation6 + $0x18] sm:$0xff]
        %v921 = vadd.f32 %v901, %v917
        %v922 = vadd.f32 %v902, %v918
        %v923 = vadd.f32 %v903, %v919
        %v924 = vadd.f32 %v904, %v920
        %v925 = vadd.f32 %v905, %v917
        %v926 = vadd.f32 %v906, %v918
        %v927 = vadd.f32 %v907, %v919
        %v928 = vadd.f32 %v908, %v920
        %v929 = vadd.f32 %v909, %v917
        %v930 = vadd.f32 %v910, %v918
        %v931 = vadd.f32 %v911, %v919
        %v932 = vadd.f32 %v912, %v920
        %v933 = vadd.f32 %v913, %v917
        %v934 = vadd.f32 %v914, %v918
        %v935 = vadd.f32 %v915, %v919
        %v936 = vadd.f32 %v916, %v920
        %vm937 = vcmask 130048
        %v938 = vsel %vm937, %v921, -inf
        %939 = vmax.xlane.f32.xlu0 %v938
        %v940 = vpop.xlane.xlu0 %939
        %v941 = vsel %vm937, %v922, -inf
        %942 = vmax.xlane.f32.xlu0 %v941
        %v943 = vpop.xlane.xlu0 %942
        %v944 = vsel %vm937, %v923, -inf
        %945 = vmax.xlane.f32.xlu0 %v944
        %v946 = vpop.xlane.xlu0 %945
        %v947 = vsel %vm937, %v924, -inf
        %948 = vmax.xlane.f32.xlu0 %v947
        %v949 = vpop.xlane.xlu0 %948
        %v950 = vsel %vm937, %v925, -inf
        %951 = vmax.xlane.f32.xlu0 %v950
        %v952 = vpop.xlane.xlu0 %951
        %v953 = vsel %vm937, %v926, -inf
        %954 = vmax.xlane.f32.xlu0 %v953
        %v955 = vpop.xlane.xlu0 %954
        %v956 = vsel %vm937, %v927, -inf
        %957 = vmax.xlane.f32.xlu0 %v956
        %v958 = vpop.xlane.xlu0 %957
        %v959 = vsel %vm937, %v928, -inf
        %960 = vmax.xlane.f32.xlu0 %v959
        %v961 = vpop.xlane.xlu0 %960
        %v962 = vsel %vm937, %v929, -inf
        %963 = vmax.xlane.f32.xlu0 %v962
        %v964 = vpop.xlane.xlu0 %963
        %v965 = vsel %vm937, %v930, -inf
        %966 = vmax.xlane.f32.xlu0 %v965
        %v967 = vpop.xlane.xlu0 %966
        %v968 = vsel %vm937, %v931, -inf
        %969 = vmax.xlane.f32.xlu0 %v968
        %v970 = vpop.xlane.xlu0 %969
        %v971 = vsel %vm937, %v932, -inf
        %972 = vmax.xlane.f32.xlu0 %v971
        %v973 = vpop.xlane.xlu0 %972
        %v974 = vsel %vm937, %v933, -inf
        %975 = vmax.xlane.f32.xlu0 %v974
        %v976 = vpop.xlane.xlu0 %975
        %v977 = vsel %vm937, %v934, -inf
        %978 = vmax.xlane.f32.xlu0 %v977
        %v979 = vpop.xlane.xlu0 %978
        %v980 = vsel %vm937, %v935, -inf
        %981 = vmax.xlane.f32.xlu0 %v980
        %v982 = vpop.xlane.xlu0 %981
        %v983 = vsel %vm937, %v936, -inf
        %984 = vmax.xlane.f32.xlu0 %v983
        %v985 = vpop.xlane.xlu0 %984
        %v986 = vsub.f32 %v921, %v940
        %v987 = vsub.f32 %v922, %v943
        %v988 = vsub.f32 %v923, %v946
        %v989 = vsub.f32 %v924, %v949
        %v990 = vsub.f32 %v925, %v952
        %v991 = vsub.f32 %v926, %v955
        %v992 = vsub.f32 %v927, %v958
        %v993 = vsub.f32 %v928, %v961
        %v994 = vsub.f32 %v929, %v964
        %v995 = vsub.f32 %v930, %v967
        %v996 = vsub.f32 %v931, %v970
        %v997 = vsub.f32 %v932, %v973
        %v998 = vsub.f32 %v933, %v976
        %v999 = vsub.f32 %v934, %v979
        %v1000 = vsub.f32 %v935, %v982
        %v1001 = vsub.f32 %v936, %v985
        %v1002 = vmul.f32 %v986, 1.442695
        %v1003 = vpow.pop %v1002
        %v1004 = vmul.f32 %v987, 1.442695
        %v1005 = vpow.pop %v1004
        %v1006 = vmul.f32 %v988, 1.442695
        %v1007 = vpow.pop %v1006
        %v1008 = vmul.f32 %v989, 1.442695
        %v1009 = vpow.pop %v1008
        %v1010 = vmul.f32 %v990, 1.442695
        %v1011 = vpow.pop %v1010
        %v1012 = vmul.f32 %v991, 1.442695
        %v1013 = vpow.pop %v1012
        %v1014 = vmul.f32 %v992, 1.442695
        %v1015 = vpow.pop %v1014
        %v1016 = vmul.f32 %v993, 1.442695
        %v1017 = vpow.pop %v1016
        %v1018 = vmul.f32 %v994, 1.442695
        %v1019 = vpow.pop %v1018
        %v1020 = vmul.f32 %v995, 1.442695
        %v1021 = vpow.pop %v1020
        %v1022 = vmul.f32 %v996, 1.442695
        %v1023 = vpow.pop %v1022
        %v1024 = vmul.f32 %v997, 1.442695
        %v1025 = vpow.pop %v1024
        %v1026 = vmul.f32 %v998, 1.442695
        %v1027 = vpow.pop %v1026
        %v1028 = vmul.f32 %v999, 1.442695
        %v1029 = vpow.pop %v1028
        %v1030 = vmul.f32 %v1000, 1.442695
        %v1031 = vpow.pop %v1030
        %v1032 = vmul.f32 %v1001, 1.442695
        %v1033 = vpow.pop %v1032
        %v1034 = vsel %vm937, %v1003, 0.0
        %1035 = vadd.xlane.f32.xlu0 %v1034
        %v1036 = vpop.xlane.xlu0 %1035
        %v1037 = vsel %vm937, %v1005, 0.0
        %1038 = vadd.xlane.f32.xlu0 %v1037
        %v1039 = vpop.xlane.xlu0 %1038
        %v1040 = vsel %vm937, %v1007, 0.0
        %1041 = vadd.xlane.f32.xlu0 %v1040
        %v1042 = vpop.xlane.xlu0 %1041
        %v1043 = vsel %vm937, %v1009, 0.0
        %1044 = vadd.xlane.f32.xlu0 %v1043
        %v1045 = vpop.xlane.xlu0 %1044
        %v1046 = vsel %vm937, %v1011, 0.0
        %1047 = vadd.xlane.f32.xlu0 %v1046
        %v1048 = vpop.xlane.xlu0 %1047
        %v1049 = vsel %vm937, %v1013, 0.0
        %1050 = vadd.xlane.f32.xlu0 %v1049
        %v1051 = vpop.xlane.xlu0 %1050
        %v1052 = vsel %vm937, %v1015, 0.0
        %1053 = vadd.xlane.f32.xlu0 %v1052
        %v1054 = vpop.xlane.xlu0 %1053
        %v1055 = vsel %vm937, %v1017, 0.0
        %1056 = vadd.xlane.f32.xlu0 %v1055
        %v1057 = vpop.xlane.xlu0 %1056
        %v1058 = vsel %vm937, %v1019, 0.0
        %1059 = vadd.xlane.f32.xlu0 %v1058
        %v1060 = vpop.xlane.xlu0 %1059
        %v1061 = vsel %vm937, %v1021, 0.0
        %1062 = vadd.xlane.f32.xlu0 %v1061
        %v1063 = vpop.xlane.xlu0 %1062
        %v1064 = vsel %vm937, %v1023, 0.0
        %1065 = vadd.xlane.f32.xlu0 %v1064
        %v1066 = vpop.xlane.xlu0 %1065
        %v1067 = vsel %vm937, %v1025, 0.0
        %1068 = vadd.xlane.f32.xlu0 %v1067
        %v1069 = vpop.xlane.xlu0 %1068
        %v1070 = vsel %vm937, %v1027, 0.0
        %1071 = vadd.xlane.f32.xlu0 %v1070
        %v1072 = vpop.xlane.xlu0 %1071
        %v1073 = vsel %vm937, %v1029, 0.0
        %1074 = vadd.xlane.f32.xlu0 %v1073
        %v1075 = vpop.xlane.xlu0 %1074
        %v1076 = vsel %vm937, %v1031, 0.0
        %1077 = vadd.xlane.f32.xlu0 %v1076
        %v1078 = vpop.xlane.xlu0 %1077
        %v1079 = vsel %vm937, %v1033, 0.0
        %1080 = vadd.xlane.f32.xlu0 %v1079
        %v1081 = vpop.xlane.xlu0 %1080
        %v1082 = vrcp.pop %v1036
        %v1083 = vrcp.pop %v1039
        %v1084 = vrcp.pop %v1042
        %v1085 = vrcp.pop %v1045
        %v1086 = vrcp.pop %v1048
        %v1087 = vrcp.pop %v1051
        %v1088 = vrcp.pop %v1054
        %v1089 = vrcp.pop %v1057
        %v1090 = vrcp.pop %v1060
        %v1091 = vrcp.pop %v1063
        %v1092 = vrcp.pop %v1066
        %v1093 = vrcp.pop %v1069
        %v1094 = vrcp.pop %v1072
        %v1095 = vrcp.pop %v1075
        %v1096 = vrcp.pop %v1078
        %v1097 = vrcp.pop %v1081
        %v1098 = vmul.f32 %v1003, %v1082
        %v1099 = vmul.f32 %v1005, %v1083
        %v1100 = vmul.f32 %v1007, %v1084
        %v1101 = vmul.f32 %v1009, %v1085
        %v1102 = vmul.f32 %v1011, %v1086
        %v1103 = vmul.f32 %v1013, %v1087
        %v1104 = vmul.f32 %v1015, %v1088
        %v1105 = vmul.f32 %v1017, %v1089
        %v1106 = vmul.f32 %v1019, %v1090
        %v1107 = vmul.f32 %v1021, %v1091
        %v1108 = vmul.f32 %v1023, %v1092
        %v1109 = vmul.f32 %v1025, %v1093
        %v1110 = vmul.f32 %v1027, %v1094
        %v1111 = vmul.f32 %v1029, %v1095
        %v1112 = vmul.f32 %v1031, %v1096
        %v1113 = vmul.f32 %v1033, %v1097
        %v1114 = vpack.c.bf16 %v1099, %v1098
        %v1115 = vpack.c.bf16 %v1101, %v1100
        %v1116 = vpack.c.bf16 %v1103, %v1102
        %v1117 = vpack.c.bf16 %v1105, %v1104
        %v1118 = vpack.c.bf16 %v1107, %v1106
        %v1119 = vpack.c.bf16 %v1109, %v1108
        %v1120 = vpack.c.bf16 %v1111, %v1110
        %v1121 = vpack.c.bf16 %v1113, %v1112
        %1122 = vrot.lane.b32.xlu0 %v460, 64
        %v1123 = vpop.permute.xlu0 %1122
        %v1126 = vsel %vm937, %v1114, 0
        %1128 = vmatprep.subr.bf16.mxu0 0
        %1129 = vmatpush1.bf16.msra.mxu0 %v1123
        %1130 = vmatprep.subr.bf16.mxu0 0
        %1131 = vmatpush1.bf16.msra.mxu0 0
        %1132 = vmatprep.subr.bf16.mxu0 0
        %1133 = vmatpush1.bf16.msra.mxu0 0
        %1134 = vmatprep.subr.bf16.mxu0 0
        %1135 = vmatpush1.bf16.msra.mxu0 0
        %1136 = vmatprep.subr.bf16.mxu0 0
        %1137 = vmatpush1.bf16.msra.mxu0 0
        %1138 = vmatprep.subr.bf16.mxu0 0
        %1139 = vmatpush1.bf16.msra.mxu0 0
        %1140 = vmatprep.subr.bf16.mxu0 0
        %1141 = vmatpush1.bf16.msra.mxu0 0
        %1142 = vmatprep.subr.bf16.mxu0 0
        %1143 = vmatpush1.bf16.msra.mxu0 0
        %1144 = vmatprep.subr.bf16.mxu0 0
        %1145 = vmatpush1.bf16.msra.mxu0 0
        %1146 = vmatprep.subr.bf16.mxu0 0
        %1147 = vmatpush1.bf16.msra.mxu0 0
        %1148 = vmatprep.subr.bf16.mxu0 0
        %1149 = vmatpush1.bf16.msra.mxu0 0
        %1150 = vmatprep.subr.bf16.mxu0 0
        %1151 = vmatpush1.bf16.msra.mxu0 0
        %1152 = vmatprep.subr.bf16.mxu0 0
        %1153 = vmatpush1.bf16.msra.mxu0 0
        %1154 = vmatprep.subr.bf16.mxu0 0
        %1155 = vmatpush1.bf16.msra.mxu0 0
        %1156 = vmatprep.subr.bf16.mxu0 0
        %1157 = vmatpush1.bf16.msra.mxu0 0
        %1158 = vmatprep.subr.bf16.mxu0 0
        %1159 = vmatpush1.bf16.msra.mxu0 0
        %1160 = vmatprep.mubr.bf16.mxu0 0
        %1161 = vmatmul.mubr.bf16.gmra.mrb[0].mxu0 %v1126
        %v1162 = vpop.f32.mrb[0].mxu0
        %v1163 = vadd.f32 0.0, %v1162
        %v1164 = vpop.f32.mrb[0].mxu0
        %v1165 = vpop.f32.mrb[0].mxu0
        %v1166 = vadd.f32 0.0, %v1165
        %v1167 = vpop.f32.mrb[0].mxu0
        %1168 = vdwg.mxu0
        %1169 = vrot.lane.b32.xlu0 %v461, 64
        %v1170 = vpop.permute.xlu0 %1169
        %v1173 = vsel %vm937, %v1115, 0
        %1175 = vmatprep.subr.bf16.mxu0 0
        %1176 = vmatpush1.bf16.msra.mxu0 %v1170
        %1177 = vmatprep.subr.bf16.mxu0 0
        %1178 = vmatpush1.bf16.msra.mxu0 0
        %1179 = vmatprep.subr.bf16.mxu0 0
        %1180 = vmatpush1.bf16.msra.mxu0 0
        %1181 = vmatprep.subr.bf16.mxu0 0
        %1182 = vmatpush1.bf16.msra.mxu0 0
        %1183 = vmatprep.subr.bf16.mxu0 0
        %1184 = vmatpush1.bf16.msra.mxu0 0
        %1185 = vmatprep.subr.bf16.mxu0 0
        %1186 = vmatpush1.bf16.msra.mxu0 0
        %1187 = vmatprep.subr.bf16.mxu0 0
        %1188 = vmatpush1.bf16.msra.mxu0 0
        %1189 = vmatprep.subr.bf16.mxu0 0
        %1190 = vmatpush1.bf16.msra.mxu0 0
        %1191 = vmatprep.subr.bf16.mxu0 0
        %1192 = vmatpush1.bf16.msra.mxu0 0
        %1193 = vmatprep.subr.bf16.mxu0 0
        %1194 = vmatpush1.bf16.msra.mxu0 0
        %1195 = vmatprep.subr.bf16.mxu0 0
        %1196 = vmatpush1.bf16.msra.mxu0 0
        %1197 = vmatprep.subr.bf16.mxu0 0
        %1198 = vmatpush1.bf16.msra.mxu0 0
        %1199 = vmatprep.subr.bf16.mxu0 0
        %1200 = vmatpush1.bf16.msra.mxu0 0
        %1201 = vmatprep.subr.bf16.mxu0 0
        %1202 = vmatpush1.bf16.msra.mxu0 0
        %1203 = vmatprep.subr.bf16.mxu0 0
        %1204 = vmatpush1.bf16.msra.mxu0 0
        %1205 = vmatprep.subr.bf16.mxu0 0
        %1206 = vmatpush1.bf16.msra.mxu0 0
        %1207 = vmatprep.mubr.bf16.mxu0 0
        %1208 = vmatmul.mubr.bf16.gmra.mrb[0].mxu0 %v1173
        %v1209 = vpop.f32.mrb[0].mxu0
        %v1210 = vadd.f32 0.0, %v1209
        %v1211 = vpop.f32.mrb[0].mxu0
        %v1212 = vpop.f32.mrb[0].mxu0
        %v1213 = vadd.f32 0.0, %v1212
        %v1214 = vpop.f32.mrb[0].mxu0
        %1215 = vdwg.mxu0
        %1216 = vrot.lane.b32.xlu0 %v462, 64
        %v1217 = vpop.permute.xlu0 %1216
        %v1220 = vsel %vm937, %v1116, 0
        %1222 = vmatprep.subr.bf16.mxu0 0
        %1223 = vmatpush1.bf16.msra.mxu0 %v1217
        %1224 = vmatprep.subr.bf16.mxu0 0
        %1225 = vmatpush1.bf16.msra.mxu0 0
        %1226 = vmatprep.subr.bf16.mxu0 0
        %1227 = vmatpush1.bf16.msra.mxu0 0
        %1228 = vmatprep.subr.bf16.mxu0 0
        %1229 = vmatpush1.bf16.msra.mxu0 0
        %1230 = vmatprep.subr.bf16.mxu0 0
        %1231 = vmatpush1.bf16.msra.mxu0 0
        %1232 = vmatprep.subr.bf16.mxu0 0
        %1233 = vmatpush1.bf16.msra.mxu0 0
        %1234 = vmatprep.subr.bf16.mxu0 0
        %1235 = vmatpush1.bf16.msra.mxu0 0
        %1236 = vmatprep.subr.bf16.mxu0 0
        %1237 = vmatpush1.bf16.msra.mxu0 0
        %1238 = vmatprep.subr.bf16.mxu0 0
        %1239 = vmatpush1.bf16.msra.mxu0 0
        %1240 = vmatprep.subr.bf16.mxu0 0
        %1241 = vmatpush1.bf16.msra.mxu0 0
        %1242 = vmatprep.subr.bf16.mxu0 0
        %1243 = vmatpush1.bf16.msra.mxu0 0
        %1244 = vmatprep.subr.bf16.mxu0 0
        %1245 = vmatpush1.bf16.msra.mxu0 0
        %1246 = vmatprep.subr.bf16.mxu0 0
        %1247 = vmatpush1.bf16.msra.mxu0 0
        %1248 = vmatprep.subr.bf16.mxu0 0
        %1249 = vmatpush1.bf16.msra.mxu0 0
        %1250 = vmatprep.subr.bf16.mxu0 0
        %1251 = vmatpush1.bf16.msra.mxu0 0
        %1252 = vmatprep.subr.bf16.mxu0 0
        %1253 = vmatpush1.bf16.msra.mxu0 0
        %1254 = vmatprep.mubr.bf16.mxu0 0
        %1255 = vmatmul.mubr.bf16.gmra.mrb[0].mxu0 %v1220
        %v1256 = vpop.f32.mrb[0].mxu0
        %v1257 = vadd.f32 0.0, %v1256
        %v1258 = vpop.f32.mrb[0].mxu0
        %v1259 = vpop.f32.mrb[0].mxu0
        %v1260 = vadd.f32 0.0, %v1259
        %v1261 = vpop.f32.mrb[0].mxu0
        %1262 = vdwg.mxu0
        %1263 = vrot.lane.b32.xlu0 %v463, 64
        %v1264 = vpop.permute.xlu0 %1263
        %v1267 = vsel %vm937, %v1117, 0
        %1269 = vmatprep.subr.bf16.mxu0 0
        %1270 = vmatpush1.bf16.msra.mxu0 %v1264
        %1271 = vmatprep.subr.bf16.mxu0 0
        %1272 = vmatpush1.bf16.msra.mxu0 0
        %1273 = vmatprep.subr.bf16.mxu0 0
        %1274 = vmatpush1.bf16.msra.mxu0 0
        %1275 = vmatprep.subr.bf16.mxu0 0
        %1276 = vmatpush1.bf16.msra.mxu0 0
        %1277 = vmatprep.subr.bf16.mxu0 0
        %1278 = vmatpush1.bf16.msra.mxu0 0
        %1279 = vmatprep.subr.bf16.mxu0 0
        %1280 = vmatpush1.bf16.msra.mxu0 0
        %1281 = vmatprep.subr.bf16.mxu0 0
        %1282 = vmatpush1.bf16.msra.mxu0 0
        %1283 = vmatprep.subr.bf16.mxu0 0
        %1284 = vmatpush1.bf16.msra.mxu0 0
        %1285 = vmatprep.subr.bf16.mxu0 0
        %1286 = vmatpush1.bf16.msra.mxu0 0
        %1287 = vmatprep.subr.bf16.mxu0 0
        %1288 = vmatpush1.bf16.msra.mxu0 0
        %1289 = vmatprep.subr.bf16.mxu0 0
        %1290 = vmatpush1.bf16.msra.mxu0 0
        %1291 = vmatprep.subr.bf16.mxu0 0
        %1292 = vmatpush1.bf16.msra.mxu0 0
        %1293 = vmatprep.subr.bf16.mxu0 0
        %1294 = vmatpush1.bf16.msra.mxu0 0
        %1295 = vmatprep.subr.bf16.mxu0 0
        %1296 = vmatpush1.bf16.msra.mxu0 0
        %1297 = vmatprep.subr.bf16.mxu0 0
        %1298 = vmatpush1.bf16.msra.mxu0 0
        %1299 = vmatprep.subr.bf16.mxu0 0
        %1300 = vmatpush1.bf16.msra.mxu0 0
        %1301 = vmatprep.mubr.bf16.mxu0 0
        %1302 = vmatmul.mubr.bf16.gmra.mrb[0].mxu0 %v1267
        %v1303 = vpop.f32.mrb[0].mxu0
        %v1304 = vadd.f32 0.0, %v1303
        %v1305 = vpop.f32.mrb[0].mxu0
        %v1306 = vpop.f32.mrb[0].mxu0
        %v1307 = vadd.f32 0.0, %v1306
        %v1308 = vpop.f32.mrb[0].mxu0
        %1309 = vdwg.mxu0
        %1310 = vrot.lane.b32.xlu0 %v464, 64
        %v1311 = vpop.permute.xlu0 %1310
        %v1314 = vsel %vm937, %v1118, 0
        %1316 = vmatprep.subr.bf16.mxu0 0
        %1317 = vmatpush1.bf16.msra.mxu0 %v1311
        %1318 = vmatprep.subr.bf16.mxu0 0
        %1319 = vmatpush1.bf16.msra.mxu0 0
        %1320 = vmatprep.subr.bf16.mxu0 0
        %1321 = vmatpush1.bf16.msra.mxu0 0
        %1322 = vmatprep.subr.bf16.mxu0 0
        %1323 = vmatpush1.bf16.msra.mxu0 0
        %1324 = vmatprep.subr.bf16.mxu0 0
        %1325 = vmatpush1.bf16.msra.mxu0 0
        %1326 = vmatprep.subr.bf16.mxu0 0
        %1327 = vmatpush1.bf16.msra.mxu0 0
        %1328 = vmatprep.subr.bf16.mxu0 0
        %1329 = vmatpush1.bf16.msra.mxu0 0
        %1330 = vmatprep.subr.bf16.mxu0 0
        %1331 = vmatpush1.bf16.msra.mxu0 0
        %1332 = vmatprep.subr.bf16.mxu0 0
        %1333 = vmatpush1.bf16.msra.mxu0 0
        %1334 = vmatprep.subr.bf16.mxu0 0
        %1335 = vmatpush1.bf16.msra.mxu0 0
        %1336 = vmatprep.subr.bf16.mxu0 0
        %1337 = vmatpush1.bf16.msra.mxu0 0
        %1338 = vmatprep.subr.bf16.mxu0 0
        %1339 = vmatpush1.bf16.msra.mxu0 0
        %1340 = vmatprep.subr.bf16.mxu0 0
        %1341 = vmatpush1.bf16.msra.mxu0 0
        %1342 = vmatprep.subr.bf16.mxu0 0
        %1343 = vmatpush1.bf16.msra.mxu0 0
        %1344 = vmatprep.subr.bf16.mxu0 0
        %1345 = vmatpush1.bf16.msra.mxu0 0
        %1346 = vmatprep.subr.bf16.mxu0 0
        %1347 = vmatpush1.bf16.msra.mxu0 0
        %1348 = vmatprep.mubr.bf16.mxu0 0
        %1349 = vmatmul.mubr.bf16.gmra.mrb[0].mxu0 %v1314
        %v1350 = vpop.f32.mrb[0].mxu0
        %v1351 = vadd.f32 0.0, %v1350
        %v1352 = vpop.f32.mrb[0].mxu0
        %v1353 = vpop.f32.mrb[0].mxu0
        %v1354 = vadd.f32 0.0, %v1353
        %v1355 = vpop.f32.mrb[0].mxu0
        %1356 = vdwg.mxu0
        %1357 = vrot.lane.b32.xlu0 %v465, 64
        %v1358 = vpop.permute.xlu0 %1357
        %v1361 = vsel %vm937, %v1119, 0
        %1363 = vmatprep.subr.bf16.mxu0 0
        %1364 = vmatpush1.bf16.msra.mxu0 %v1358
        %1365 = vmatprep.subr.bf16.mxu0 0
        %1366 = vmatpush1.bf16.msra.mxu0 0
        %1367 = vmatprep.subr.bf16.mxu0 0
        %1368 = vmatpush1.bf16.msra.mxu0 0
        %1369 = vmatprep.subr.bf16.mxu0 0
        %1370 = vmatpush1.bf16.msra.mxu0 0
        %1371 = vmatprep.subr.bf16.mxu0 0
        %1372 = vmatpush1.bf16.msra.mxu0 0
        %1373 = vmatprep.subr.bf16.mxu0 0
        %1374 = vmatpush1.bf16.msra.mxu0 0
        %1375 = vmatprep.subr.bf16.mxu0 0
        %1376 = vmatpush1.bf16.msra.mxu0 0
        %1377 = vmatprep.subr.bf16.mxu0 0
        %1378 = vmatpush1.bf16.msra.mxu0 0
        %1379 = vmatprep.subr.bf16.mxu0 0
        %1380 = vmatpush1.bf16.msra.mxu0 0
        %1381 = vmatprep.subr.bf16.mxu0 0
        %1382 = vmatpush1.bf16.msra.mxu0 0
        %1383 = vmatprep.subr.bf16.mxu0 0
        %1384 = vmatpush1.bf16.msra.mxu0 0
        %1385 = vmatprep.subr.bf16.mxu0 0
        %1386 = vmatpush1.bf16.msra.mxu0 0
        %1387 = vmatprep.subr.bf16.mxu0 0
        %1388 = vmatpush1.bf16.msra.mxu0 0
        %1389 = vmatprep.subr.bf16.mxu0 0
        %1390 = vmatpush1.bf16.msra.mxu0 0
        %1391 = vmatprep.subr.bf16.mxu0 0
        %1392 = vmatpush1.bf16.msra.mxu0 0
        %1393 = vmatprep.subr.bf16.mxu0 0
        %1394 = vmatpush1.bf16.msra.mxu0 0
        %1395 = vmatprep.mubr.bf16.mxu0 0
        %1396 = vmatmul.mubr.bf16.gmra.mrb[0].mxu0 %v1361
        %v1397 = vpop.f32.mrb[0].mxu0
        %v1398 = vadd.f32 0.0, %v1397
        %v1399 = vpop.f32.mrb[0].mxu0
        %v1400 = vpop.f32.mrb[0].mxu0
        %v1401 = vadd.f32 0.0, %v1400
        %v1402 = vpop.f32.mrb[0].mxu0
        %1403 = vdwg.mxu0
        %1404 = vrot.lane.b32.xlu0 %v466, 64
        %v1405 = vpop.permute.xlu0 %1404
        %v1408 = vsel %vm937, %v1120, 0
        %1410 = vmatprep.subr.bf16.mxu0 0
        %1411 = vmatpush1.bf16.msra.mxu0 %v1405
        %1412 = vmatprep.subr.bf16.mxu0 0
        %1413 = vmatpush1.bf16.msra.mxu0 0
        %1414 = vmatprep.subr.bf16.mxu0 0
        %1415 = vmatpush1.bf16.msra.mxu0 0
        %1416 = vmatprep.subr.bf16.mxu0 0
        %1417 = vmatpush1.bf16.msra.mxu0 0
        %1418 = vmatprep.subr.bf16.mxu0 0
        %1419 = vmatpush1.bf16.msra.mxu0 0
        %1420 = vmatprep.subr.bf16.mxu0 0
        %1421 = vmatpush1.bf16.msra.mxu0 0
        %1422 = vmatprep.subr.bf16.mxu0 0
        %1423 = vmatpush1.bf16.msra.mxu0 0
        %1424 = vmatprep.subr.bf16.mxu0 0
        %1425 = vmatpush1.bf16.msra.mxu0 0
        %1426 = vmatprep.subr.bf16.mxu0 0
        %1427 = vmatpush1.bf16.msra.mxu0 0
        %1428 = vmatprep.subr.bf16.mxu0 0
        %1429 = vmatpush1.bf16.msra.mxu0 0
        %1430 = vmatprep.subr.bf16.mxu0 0
        %1431 = vmatpush1.bf16.msra.mxu0 0
        %1432 = vmatprep.subr.bf16.mxu0 0
        %1433 = vmatpush1.bf16.msra.mxu0 0
        %1434 = vmatprep.subr.bf16.mxu0 0
        %1435 = vmatpush1.bf16.msra.mxu0 0
        %1436 = vmatprep.subr.bf16.mxu0 0
        %1437 = vmatpush1.bf16.msra.mxu0 0
        %1438 = vmatprep.subr.bf16.mxu0 0
        %1439 = vmatpush1.bf16.msra.mxu0 0
        %1440 = vmatprep.subr.bf16.mxu0 0
        %1441 = vmatpush1.bf16.msra.mxu0 0
        %1442 = vmatprep.mubr.bf16.mxu0 0
        %1443 = vmatmul.mubr.bf16.gmra.mrb[0].mxu0 %v1408
        %v1444 = vpop.f32.mrb[0].mxu0
        %v1445 = vadd.f32 0.0, %v1444
        %v1446 = vpop.f32.mrb[0].mxu0
        %v1447 = vpop.f32.mrb[0].mxu0
        %v1448 = vadd.f32 0.0, %v1447
        %v1449 = vpop.f32.mrb[0].mxu0
        %1450 = vdwg.mxu0
        %1451 = vrot.lane.b32.xlu0 %v467, 64
        %v1452 = vpop.permute.xlu0 %1451
        %v1455 = vsel %vm937, %v1121, 0
        %1457 = vmatprep.subr.bf16.mxu0 0
        %1458 = vmatpush1.bf16.msra.mxu0 %v1452
        %1459 = vmatprep.subr.bf16.mxu0 0
        %1460 = vmatpush1.bf16.msra.mxu0 0
        %1461 = vmatprep.subr.bf16.mxu0 0
        %1462 = vmatpush1.bf16.msra.mxu0 0
        %1463 = vmatprep.subr.bf16.mxu0 0
        %1464 = vmatpush1.bf16.msra.mxu0 0
        %1465 = vmatprep.subr.bf16.mxu0 0
        %1466 = vmatpush1.bf16.msra.mxu0 0
        %1467 = vmatprep.subr.bf16.mxu0 0
        %1468 = vmatpush1.bf16.msra.mxu0 0
        %1469 = vmatprep.subr.bf16.mxu0 0
        %1470 = vmatpush1.bf16.msra.mxu0 0
        %1471 = vmatprep.subr.bf16.mxu0 0
        %1472 = vmatpush1.bf16.msra.mxu0 0
        %1473 = vmatprep.subr.bf16.mxu0 0
        %1474 = vmatpush1.bf16.msra.mxu0 0
        %1475 = vmatprep.subr.bf16.mxu0 0
        %1476 = vmatpush1.bf16.msra.mxu0 0
        %1477 = vmatprep.subr.bf16.mxu0 0
        %1478 = vmatpush1.bf16.msra.mxu0 0
        %1479 = vmatprep.subr.bf16.mxu0 0
        %1480 = vmatpush1.bf16.msra.mxu0 0
        %1481 = vmatprep.subr.bf16.mxu0 0
        %1482 = vmatpush1.bf16.msra.mxu0 0
        %1483 = vmatprep.subr.bf16.mxu0 0
        %1484 = vmatpush1.bf16.msra.mxu0 0
        %1485 = vmatprep.subr.bf16.mxu0 0
        %1486 = vmatpush1.bf16.msra.mxu0 0
        %1487 = vmatprep.subr.bf16.mxu0 0
        %1488 = vmatpush1.bf16.msra.mxu0 0
        %1489 = vmatprep.mubr.bf16.mxu0 0
        %1490 = vmatmul.mubr.bf16.gmra.mrb[0].mxu0 %v1455
        %v1491 = vpop.f32.mrb[0].mxu0
        %v1492 = vadd.f32 0.0, %v1491
        %v1493 = vpop.f32.mrb[0].mxu0
        %v1494 = vpop.f32.mrb[0].mxu0
        %v1495 = vadd.f32 0.0, %v1494
        %v1496 = vpop.f32.mrb[0].mxu0
        %1497 = vdwg.mxu0
        %1502 = vrot.lane.b32.xlu0 %v1257, 8
        %v1503 = vpop.permute.xlu0 %1502
        %1504 = vrot.lane.b32.xlu0 %v1260, 8
        %v1505 = vpop.permute.xlu0 %1504
        %1506 = vrot.lane.b32.xlu0 %v1304, 8
        %v1507 = vpop.permute.xlu0 %1506
        %1508 = vrot.lane.b32.xlu0 %v1307, 8
        %v1509 = vpop.permute.xlu0 %1508
        %1518 = vrot.lane.b32.xlu0 %v1351, 16
        %v1519 = vpop.permute.xlu0 %1518
        %1520 = vrot.lane.b32.xlu0 %v1354, 16
        %v1521 = vpop.permute.xlu0 %1520
        %1522 = vrot.lane.b32.xlu0 %v1398, 16
        %v1523 = vpop.permute.xlu0 %1522
        %1524 = vrot.lane.b32.xlu0 %v1401, 16
        %v1525 = vpop.permute.xlu0 %1524
        %1534 = vrot.lane.b32.xlu0 %v1445, 24
        %v1535 = vpop.permute.xlu0 %1534
        %1536 = vrot.lane.b32.xlu0 %v1448, 24
        %v1537 = vpop.permute.xlu0 %1536
        %1538 = vrot.lane.b32.xlu0 %v1492, 24
        %v1539 = vpop.permute.xlu0 %1538
        %1540 = vrot.lane.b32.xlu0 %v1495, 24
        %v1541 = vpop.permute.xlu0 %1540
        %v1546 = vsel %vm471, %v1163, %v1503
        %v1547 = vsel %vm471, %v1166, %v1505
        %v1548 = vsel %vm471, %v1210, %v1507
        %v1549 = vsel %vm471, %v1213, %v1509
        %v1550 = vsel %vm937, %v1546, %v1519
        %v1551 = vsel %vm937, %v1547, %v1521
        %v1552 = vsel %vm937, %v1548, %v1523
        %v1553 = vsel %vm937, %v1549, %v1525
        %vm1554 = vcmask 195584
        %v1555 = vsel %vm1554, %v1550, %v1535
        %v1556 = vsel %vm1554, %v1551, %v1537
        %v1557 = vsel %vm1554, %v1552, %v1539
        %v1558 = vsel %vm1554, %v1553, %v1541
        %v1559 = vpack.c.bf16 %v1556, %v1555
        %v1560 = vpack.c.bf16 %v1558, %v1557
        %v1561 = vld [vmem:[#allocation4] sm:$0xf]
        %v1562 = vld [vmem:[#allocation4 + $0x4] sm:$0xf]
        %v1563 = vld [vmem:[#allocation4 + $0x8] sm:$0xf]
        %v1564 = vld [vmem:[#allocation4 + $0xc] sm:$0xf]
        %v1565 = vld [vmem:[%s4] sm:$0x1]
        %v1567 = vlaneseq
        %v1568 = vshrl.u32 %v1567, 7
        %v1569 = vsub.s32 0, %v1568
        %v1570 = vrot.slane %v1565, %v1569
        %v1576 = vunpack.c.l.b16 %v1561
        %v1577 = vunpack.c.l.b16 %v1562
        %v1578 = vunpack.c.l.b16 %v1563
        %v1579 = vunpack.c.l.b16 %v1564
        %v1580 = vpack.c.b16 %v1577, %v1576
        %v1581 = vpack.c.b16 %v1579, %v1578
        %v1585 = vsel %vm364, %v1559, 0
        %v1588 = vsel %vm364, %v1560, 0
        %1590 = vmatprep.subr.bf16.mxu0 0
        %1591 = vmatpush1.bf16.msra.mxu0 %v1580
        %1592 = vmatprep.subr.bf16.mxu0 0
        %1593 = vmatpush1.bf16.msra.mxu0 %v1581
        %1594 = vmatprep.subr.bf16.mxu0 0
        %1595 = vmatpush1.bf16.msra.mxu0 0
        %1596 = vmatprep.subr.bf16.mxu0 0
        %1597 = vmatpush1.bf16.msra.mxu0 0
        %1598 = vmatprep.subr.bf16.mxu0 0
        %1599 = vmatpush1.bf16.msra.mxu0 0
        %1600 = vmatprep.subr.bf16.mxu0 0
        %1601 = vmatpush1.bf16.msra.mxu0 0
        %1602 = vmatprep.subr.bf16.mxu0 0
        %1603 = vmatpush1.bf16.msra.mxu0 0
        %1604 = vmatprep.subr.bf16.mxu0 0
        %1605 = vmatpush1.bf16.msra.mxu0 0
        %1606 = vmatprep.subr.bf16.mxu0 0
        %1607 = vmatpush1.bf16.msra.mxu0 0
        %1608 = vmatprep.subr.bf16.mxu0 0
        %1609 = vmatpush1.bf16.msra.mxu0 0
        %1610 = vmatprep.subr.bf16.mxu0 0
        %1611 = vmatpush1.bf16.msra.mxu0 0
        %1612 = vmatprep.subr.bf16.mxu0 0
        %1613 = vmatpush1.bf16.msra.mxu0 0
        %1614 = vmatprep.subr.bf16.mxu0 0
        %1615 = vmatpush1.bf16.msra.mxu0 0
        %1616 = vmatprep.subr.bf16.mxu0 0
        %1617 = vmatpush1.bf16.msra.mxu0 0
        %1618 = vmatprep.subr.bf16.mxu0 0
        %1619 = vmatpush1.bf16.msra.mxu0 0
        %1620 = vmatprep.subr.bf16.mxu0 0
        %1621 = vmatpush1.bf16.msra.mxu0 0
        %1622 = vmatprep.mubr.bf16.mxu0 0
        %1623 = vmatmul.mubr.bf16.gmra.mrb[0].mxu0 %v1585
        %v1624 = vpop.f32.mrb[0].mxu0
        %v1625 = vadd.f32 %v1570, %v1624
        %v1626 = vpop.f32.mrb[0].mxu0
        %v1627 = vpop.f32.mrb[0].mxu0
        %v1628 = vadd.f32 %v1570, %v1627
        %v1629 = vpop.f32.mrb[0].mxu0
        %1630 = vmatprep.mubr.bf16.mxu0 0
        %1631 = vmatmul.mubr.bf16.gmra.mrb[0].mxu0 %v1588
        %v1632 = vpop.f32.mrb[0].mxu0
        %v1633 = vadd.f32 %v1570, %v1632
        %v1634 = vpop.f32.mrb[0].mxu0
        %v1635 = vpop.f32.mrb[0].mxu0
        %v1636 = vadd.f32 %v1570, %v1635
        %v1637 = vpop.f32.mrb[0].mxu0
        %1638 = vdwg.mxu0
        %v1639 = vpack.c.bf16 %v1628, %v1625
        %v1640 = vpack.c.bf16 %v1636, %v1633
        %v1643 = vunpack.c.l.b16 %v1639
        %v1644 = vunpack.c.h.b16 %v1639
        %v1645 = vunpack.c.l.b16 %v1640
        %v1646 = vunpack.c.h.b16 %v1640
        %v1647 = vpack.c.b16 %v1643, %v1643
        %v1648 = vpack.c.b16 %v1644, %v1644
        %v1649 = vpack.c.b16 %v1645, %v1645
        %v1650 = vpack.c.b16 %v1646, %v1646
        %vm1655 = vcmask 257024
        %1656 = vst.msk [vmem:[%s324] sm:$0xf] %vm1655, %v1647
        %1657 = vst.msk [vmem:[%s324 + $0x4] sm:$0xf] %vm1655, %v1648
        %1658 = vst.msk [vmem:[%s324 + $0x8] sm:$0xf] %vm1655, %v1649
        %1659 = vst.msk [vmem:[%s324 + $0xc] sm:$0xf] %vm1655, %v1650
        %s1660 = smul.u32 4, %s20
        %p1661 = scmp.lt.s32.totalorder %s1660, 7
        %s1662 = scalar_select %p1661, %s1660, 7
        %s1663 = smul.addr %s1662, 4
        %s1664 = scalar_lea.vmem %s7, %s1663
        // Predicated region
        $region61: #{tpu_custom_call.1} parent=47 // pred_check
          %p1665 = pneg %p190
        $region62: #{tpu_custom_call.1} parent=47 // pred_check_branch
          %1667 = sbr.rel (%p1665) target = $region64
        $region63: #{tpu_custom_call.1} parent=47 // pred_region
          %s1668 = smul.u32 4, %s20
        $region64: #{tpu_custom_call.1} parent=47 // pred_fallthru
          _
      $region48: #{tpu_custom_call.1} parent=5 // pred_fallthru
        _
      %p1669 = scmp.le.s32.totalorder 2, %s15
      // Predicated region
      $region65: #{tpu_custom_call.1} parent=5 // pred_check
        %p1670 = pneg %p1669
      $region66: #{tpu_custom_call.1} parent=5 // pred_check_branch
        %1672 = sbr.rel (%p1670) target = $region68
      $region67: #{tpu_custom_call.1} parent=5 // pred_region
        %s1673 = ssub.s32 %s15, 2
        // Predicated region
        $region69: #{tpu_custom_call.1} parent=67 // pred_check
          %p1674 = pneg %p196
        $region70: #{tpu_custom_call.1} parent=67 // pred_check_branch
          %1676 = sbr.rel (%p1674) target = $region72
        $region71: #{tpu_custom_call.1} parent=67 // pred_region
          %s1677 = smul.u32 4, %s21
          %p1678 = scmp.lt.s32.totalorder %s1677, 7
          %s1679 = scalar_select %p1678, %s1677, 7
          %s1680 = smul.addr %s1679, 4
          %s1681 = scalar_lea.vmem %s7, %s1680
        $region72: #{tpu_custom_call.1} parent=67 // pred_fallthru
          _
      $region68: #{tpu_custom_call.1} parent=5 // pred_fallthru
        _
    $region6: #{tpu_custom_call.1} parent=1 // loop_footer
      %s19 = sadd.s32 1, %s15
    $region7: #{tpu_custom_call.1} parent=1 // loop_footer_branch
      %14 = sbr.rel target = $region3
    $region8: #{tpu_custom_call.1} parent=1 // loop_exit
      _
    %1682 = vsyncpa [#allocation3], 1
    %s1683 = scalar_lea.sflag [#allocation3], 1
    %1684 = vsyncpa %s1683, 1
    %1685 = vsyncpa [#allocation5], 1

</llo_original>
